<compile_context>
chip_gen: v7x
topology: tpu7x:2x2x1
jax: 0.10.0
libtpu: 0.0.40
codegen_flags: <defaults>
</compile_context>

<pallas_src>
import jax
import jax.numpy as jnp
from jax.experimental import pallas as pl
from jax.experimental.pallas import tpu as pltpu

H = 256          # hidden width
NEG_SLOPE = 0.2  # LeakyReLU slope
LANE = 128       # TPU lane width
MAX_TB = 8192    # keeps per-step VMEM (~31 MB at 8192) under the 48 MiB limit


def _round_up(n, m):
    return ((n + m - 1) // m) * m


def _leaky_relu(x):
    # slope in (0, 1)  =>  leaky_relu(x) == max(x, slope * x): 2 VPU ops, no select.
    return jnp.maximum(x, NEG_SLOPE * x)


def disc_kernel(xT_ref, w1c0_ref, w1c1_ref, b1_ref, w2t_ref, b2_ref, w3_ref,
                b3_ref, o_ref):
    # Batch is on the lane axis: xT is (2, TB), activations are (H, TB),
    # the output is a lane-dense (1, TB) row.
    x0 = xT_ref[0:1, :]                                    # (1, TB)
    x1 = xT_ref[1:2, :]                                    # (1, TB)

    # ---- Layer 1 (K=2): two rank-1 broadcast FMAs on the VPU ----
    # (A K=2 MXU matmul would pad K to 128/256 for ~1% utilization.)
    h1 = w1c0_ref[...] * x0 + w1c1_ref[...] * x1 + b1_ref[...]   # (H, TB)
    h1 = _leaky_relu(h1)

    # ---- Layer 2 (256x256): the only real matmul -> MXU ----
    # Operands take the resident-weight dtype (bf16 by default -> ~3x MXU
    # throughput vs f32 emulation); accumulation stays f32.
    h2 = jnp.dot(w2t_ref[...], h1.astype(w2t_ref.dtype),
                 preferred_element_type=jnp.float32)             # (H, TB)
    h2 = _leaky_relu(h2 + b2_ref[...])

    # ---- Layer 3 (N=1): elementwise mul + cross-sublane reduce (VPU/XLU) ----
    o_ref[...] = (jnp.sum(h2 * w3_ref[...], axis=0, keepdims=True)
                  + b3_ref[0, 0])                                # (1, TB)


def discriminator_forward(x, params, *, block_batch=2048,
                          matmul_dtype=jnp.bfloat16):
    """x: (B, 2) float32 -> (B, 1) float32."""
    w1, b1, w2, b2, w3, b3 = params
    B = x.shape[0]

    # Batch tile on the lane axis. Small B: one full-array block. Large B:
    # >=2 lane-aligned (multiple-of-128) tiles so v7x megacore gets both
    # TensorCores busy, capped by block_batch (step-overhead amortization)
    # and MAX_TB (VMEM budget on v7x's 64 MiB).
    if B <= LANE:
        tb = B
    else:
        half = _round_up(pl.cdiv(B, 2), LANE)
        tb = min(_round_up(min(block_batch, MAX_TB), LANE), half)
    grid = (pl.cdiv(B, tb),)

    # Lane-dense layout plumbing (pure reshape/transpose in the wrapper).
    xT = x.T                                     # (2, B)
    w1c0 = w1[0].reshape(H, 1)
    w1c1 = w1[1].reshape(H, 1)
    b1c = b1.reshape(H, 1)
    w2t = w2.T.astype(matmul_dtype)              # (H, H) resident (bf16 default)
    b2c = b2.reshape(H, 1)
    w3c = w3.reshape(H, 1)
    b3s = b3.reshape(1, 1)

    def resident(shape):
        # Constant index_map -> fetched once, stays VMEM-resident across steps.
        return pl.BlockSpec(shape, lambda i: (0, 0))

    flops = B * (4 * H + 2 * H * H + 2 * H)
    bytes_accessed = (4 * (3 * B + 5 * H + 1)
                      + jnp.dtype(matmul_dtype).itemsize * H * H)

    out_row = pl.pallas_call(
        disc_kernel,
        out_shape=jax.ShapeDtypeStruct((1, B), jnp.float32),
        grid=grid,
        in_specs=[
            pl.BlockSpec((2, tb), lambda i: (0, i)),            # x^T tile (pipelined)
            resident((H, 1)),                                   # w1 column 0
            resident((H, 1)),                                   # w1 column 1
            resident((H, 1)),                                   # b1
            resident((H, H)),                                   # w2^T (bf16 by default)
            resident((H, 1)),                                   # b2
            resident((H, 1)),                                   # w3
            pl.BlockSpec(memory_space=pltpu.MemorySpace.SMEM),  # b3 scalar
        ],
        out_specs=pl.BlockSpec((1, tb), lambda i: (0, i)),      # lane-dense output row
        compiler_params=pltpu.CompilerParams(
            dimension_semantics=("parallel",),    # megacore sharding on v7x
            vmem_limit_bytes=48 * 1024 * 1024,    # safe on v7x (64 MiB physical)
        ),
        cost_estimate=pl.CostEstimate(
            flops=flops, transcendentals=0, bytes_accessed=bytes_accessed),
    )(xT, w1c0, w1c1, b1c, w2t, b2c, w3c, b3s)

    return out_row.reshape(B, 1)


def init_params(key):
    """Deterministic init matching nn.Linear's default U(-1/sqrt(fan_in), +1/sqrt(fan_in))."""
    dims = [(2, H), (H, H), (H, 1)]
    keys = jax.random.split(key, 2 * len(dims))
    params = []
    for i, (fan_in, fan_out) in enumerate(dims):
        bound = 1.0 / jnp.sqrt(float(fan_in))
        w = jax.random.uniform(keys[2 * i], (fan_in, fan_out), jnp.float32,
                               minval=-bound, maxval=bound)
        b = jax.random.uniform(keys[2 * i + 1], (fan_out,), jnp.float32,
                               minval=-bound, maxval=bound)
        params += [w, b]
    return tuple(params)


def reference_forward(x, params):
    w1, b1, w2, b2, w3, b3 = params
    hp = jax.lax.Precision.HIGHEST
    h1 = jax.nn.leaky_relu(jnp.dot(x, w1, precision=hp) + b1, NEG_SLOPE)
    h2 = jax.nn.leaky_relu(jnp.dot(h1, w2, precision=hp) + b2, NEG_SLOPE)
    return jnp.dot(h2, w3, precision=hp) + b3


if __name__ == "__main__":
    key = jax.random.PRNGKey(0)
    pkey, xkey1, xkey2, xkey3 = jax.random.split(key, 4)
    params = init_params(pkey)

    # Case 1: tiny batch, single full-array block, f32 matmul path -> tight check.
    B1 = 8
    x1 = jax.random.normal(xkey1, (B1, 2), dtype=jnp.float32)
    out1 = jax.block_until_ready(
        discriminator_forward(x1, params, matmul_dtype=jnp.float32))
    ref1 = reference_forward(x1, params)
    assert out1.shape == (B1, 1), out1.shape
    assert jnp.allclose(out1, ref1, atol=1e-5, rtol=1e-5), (out1, ref1)

    # Case 2: batch split into two lane-aligned tiles (grid=(2,)), default bf16
    # MXU path -> loose tolerance against the f32 reference.
    B2 = 256
    x2 = jax.random.normal(xkey2, (B2, 2), dtype=jnp.float32)
    out2 = jax.block_until_ready(discriminator_forward(x2, params))
    ref2 = reference_forward(x2, params)
    assert out2.shape == (B2, 1), out2.shape
    assert jnp.allclose(out2, ref2, atol=5e-2, rtol=5e-2), (out2, ref2)

    # Case 3: non-divisible batch (partial last tile), f32 path -> tight check.
    B3 = 200
    x3 = jax.random.normal(xkey3, (B3, 2), dtype=jnp.float32)
    out3 = jax.block_until_ready(
        discriminator_forward(x3, params, matmul_dtype=jnp.float32))
    ref3 = reference_forward(x3, params)
    assert out3.shape == (B3, 1), out3.shape
    assert jnp.allclose(out3, ref3, atol=1e-5, rtol=1e-5), (out3, ref3)

    print("KERNEL_OK")
</pallas_src>

<mosaic_0001>
module attributes {stable_mosaic.version = 11 : i64} {
  func.func @disc_kernel(%arg0: i32, %arg1: memref<2x8xf32, #tpu.memory_space<vmem>>, %arg2: memref<256x1xf32, #tpu.memory_space<vmem>>, %arg3: memref<256x1xf32, #tpu.memory_space<vmem>>, %arg4: memref<256x1xf32, #tpu.memory_space<vmem>>, %arg5: memref<256x256xf32, #tpu.memory_space<vmem>>, %arg6: memref<256x1xf32, #tpu.memory_space<vmem>>, %arg7: memref<256x1xf32, #tpu.memory_space<vmem>>, %arg8: memref<1x1xf32, #tpu.memory_space<smem>>, %arg9: memref<1x8xf32, #tpu.memory_space<vmem>>) attributes {dimension_semantics = [#tpu.dimension_semantics<parallel>], iteration_bounds = array<i64: 1>, scalar_prefetch = 0 : i64, scratch_operands = 0 : i64, tpu.core_type = #tpu.core_type<tc>, window_params = [{transform_indices = @transform_0, window_bounds = array<i64: 2, 8>}, {pipeline_mode = #tpu.pipeline_mode<synchronous>, transform_indices = @transform_1, window_bounds = array<i64: 256, 1>}, {pipeline_mode = #tpu.pipeline_mode<synchronous>, transform_indices = @transform_2, window_bounds = array<i64: 256, 1>}, {pipeline_mode = #tpu.pipeline_mode<synchronous>, transform_indices = @transform_3, window_bounds = array<i64: 256, 1>}, {pipeline_mode = #tpu.pipeline_mode<synchronous>, transform_indices = @transform_4, window_bounds = array<i64: 256, 256>}, {pipeline_mode = #tpu.pipeline_mode<synchronous>, transform_indices = @transform_5, window_bounds = array<i64: 256, 1>}, {pipeline_mode = #tpu.pipeline_mode<synchronous>, transform_indices = @transform_6, window_bounds = array<i64: 256, 1>}, {transform_indices = @transform_7, window_bounds = array<i64: 1, 1>}, {transform_indices = @transform_8, window_bounds = array<i64: 1, 8>}]} {
    %c0 = arith.constant 0 : index
    %c0_0 = arith.constant 0 : index
    %0 = vector.load %arg1[%c0, %c0_0] : memref<2x8xf32, #tpu.memory_space<vmem>>, vector<1x8xf32>
    %c1 = arith.constant 1 : index
    %c0_1 = arith.constant 0 : index
    %1 = vector.load %arg1[%c1, %c0_1] : memref<2x8xf32, #tpu.memory_space<vmem>>, vector<1x8xf32>
    %c0_2 = arith.constant 0 : index
    %c0_3 = arith.constant 0 : index
    %2 = vector.load %arg2[%c0_2, %c0_3] : memref<256x1xf32, #tpu.memory_space<vmem>>, vector<256x1xf32>
    %3 = vector.broadcast %2 : vector<256x1xf32> to vector<256x8xf32>
    %4 = vector.broadcast %0 : vector<1x8xf32> to vector<256x8xf32>
    %5 = arith.mulf %3, %4 : vector<256x8xf32>
    %c0_4 = arith.constant 0 : index
    %c0_5 = arith.constant 0 : index
    %6 = vector.load %arg3[%c0_4, %c0_5] : memref<256x1xf32, #tpu.memory_space<vmem>>, vector<256x1xf32>
    %7 = vector.broadcast %6 : vector<256x1xf32> to vector<256x8xf32>
    %8 = vector.broadcast %1 : vector<1x8xf32> to vector<256x8xf32>
    %9 = arith.mulf %7, %8 : vector<256x8xf32>
    %10 = arith.addf %5, %9 : vector<256x8xf32>
    %c0_6 = arith.constant 0 : index
    %c0_7 = arith.constant 0 : index
    %11 = vector.load %arg4[%c0_6, %c0_7] : memref<256x1xf32, #tpu.memory_space<vmem>>, vector<256x1xf32>
    %12 = vector.broadcast %11 : vector<256x1xf32> to vector<256x8xf32>
    %13 = arith.addf %10, %12 : vector<256x8xf32>
    %cst = arith.constant 2.000000e-01 : f32
    %14 = vector.broadcast %cst : f32 to vector<256x8xf32>
    %15 = arith.mulf %14, %13 : vector<256x8xf32>
    %16 = arith.maximumf %13, %15 : vector<256x8xf32>
    %c0_8 = arith.constant 0 : index
    %c0_9 = arith.constant 0 : index
    %17 = vector.load %arg5[%c0_8, %c0_9] : memref<256x256xf32, #tpu.memory_space<vmem>>, vector<256x256xf32>
    %cst_10 = arith.constant dense<0.000000e+00> : vector<256x8xf32>
    %18 = tpu.matmul %17, %16, %cst_10 {dimension_numbers = #tpu.dot_dimension_numbers<[1], [0], [0], [1], [0, 0, 1, 1], [], []>} : vector<256x256xf32>, vector<256x8xf32>, vector<256x8xf32> -> vector<256x8xf32>
    %c0_11 = arith.constant 0 : index
    %c0_12 = arith.constant 0 : index
    %19 = vector.load %arg6[%c0_11, %c0_12] : memref<256x1xf32, #tpu.memory_space<vmem>>, vector<256x1xf32>
    %20 = vector.broadcast %19 : vector<256x1xf32> to vector<256x8xf32>
    %21 = arith.addf %18, %20 : vector<256x8xf32>
    %cst_13 = arith.constant 2.000000e-01 : f32
    %22 = vector.broadcast %cst_13 : f32 to vector<256x8xf32>
    %23 = arith.mulf %22, %21 : vector<256x8xf32>
    %24 = arith.maximumf %21, %23 : vector<256x8xf32>
    %c0_14 = arith.constant 0 : index
    %c0_15 = arith.constant 0 : index
    %25 = vector.load %arg7[%c0_14, %c0_15] : memref<256x1xf32, #tpu.memory_space<vmem>>, vector<256x1xf32>
    %26 = vector.broadcast %25 : vector<256x1xf32> to vector<256x8xf32>
    %27 = arith.mulf %24, %26 : vector<256x8xf32>
    %cst_16 = arith.constant dense<0.000000e+00> : vector<8xf32>
    %28 = vector.multi_reduction <add>, %27, %cst_16 [0] : vector<256x8xf32> to vector<8xf32>
    %29 = vector.shape_cast %28 : vector<8xf32> to vector<1x8xf32>
    %c0_17 = arith.constant 0 : index
    %c0_18 = arith.constant 0 : index
    %30 = memref.load %arg8[%c0_17, %c0_18] : memref<1x1xf32, #tpu.memory_space<smem>>
    %31 = vector.broadcast %30 : f32 to vector<1x8xf32>
    %32 = arith.addf %29, %31 : vector<1x8xf32>
    %c0_19 = arith.constant 0 : index
    %c0_20 = arith.constant 0 : index
    %33 = vector.load %arg9[%c0_19, %c0_20] : memref<1x8xf32, #tpu.memory_space<vmem>>, vector<1x8xf32>
    tpu.vector_store %arg9[%c0_19, %c0_20], %32 {strides = array<i32>} : memref<1x8xf32, #tpu.memory_space<vmem>>, vector<1x8xf32>,
    return
  }
  func.func @transform_0(%arg0: i32) -> (i32, i32) {
    %c0_i32 = arith.constant 0 : i32
    %c0_i32_0 = arith.constant 0 : i32
    return %c0_i32, %arg0 : i32, i32
  }
  func.func @transform_1(%arg0: i32) -> (i32, i32) {
    %c0_i32 = arith.constant 0 : i32
    %c0_i32_0 = arith.constant 0 : i32
    %c0_i32_1 = arith.constant 0 : i32
    return %c0_i32, %c0_i32_0 : i32, i32
  }
  func.func @transform_2(%arg0: i32) -> (i32, i32) {
    %c0_i32 = arith.constant 0 : i32
    %c0_i32_0 = arith.constant 0 : i32
    %c0_i32_1 = arith.constant 0 : i32
    return %c0_i32, %c0_i32_0 : i32, i32
  }
  func.func @transform_3(%arg0: i32) -> (i32, i32) {
    %c0_i32 = arith.constant 0 : i32
    %c0_i32_0 = arith.constant 0 : i32
    %c0_i32_1 = arith.constant 0 : i32
    return %c0_i32, %c0_i32_0 : i32, i32
  }
  func.func @transform_4(%arg0: i32) -> (i32, i32) {
    %c0_i32 = arith.constant 0 : i32
    %c0_i32_0 = arith.constant 0 : i32
    %c0_i32_1 = arith.constant 0 : i32
    return %c0_i32, %c0_i32_0 : i32, i32
  }
  func.func @transform_5(%arg0: i32) -> (i32, i32) {
    %c0_i32 = arith.constant 0 : i32
    %c0_i32_0 = arith.constant 0 : i32
    %c0_i32_1 = arith.constant 0 : i32
    return %c0_i32, %c0_i32_0 : i32, i32
  }
  func.func @transform_6(%arg0: i32) -> (i32, i32) {
    %c0_i32 = arith.constant 0 : i32
    %c0_i32_0 = arith.constant 0 : i32
    %c0_i32_1 = arith.constant 0 : i32
    return %c0_i32, %c0_i32_0 : i32, i32
  }
  func.func @transform_7(%arg0: i32) -> (i32, i32) {
    %c0_i32 = arith.constant 0 : i32
    %c0_i32_0 = arith.constant 0 : i32
    %c0_i32_1 = arith.constant 0 : i32
    return %c0_i32, %c0_i32_0 : i32, i32
  }
  func.func @transform_8(%arg0: i32) -> (i32, i32) {
    %c0_i32 = arith.constant 0 : i32
    %c0_i32_0 = arith.constant 0 : i32
    return %c0_i32, %arg0 : i32, i32
  }
}

</mosaic_0001>

<llo_original>
// kernel: tpu_custom_call.1
$region0: #{tpu_custom_call.1}
  #allocation0 [shape = 'u32[]', space=smem, size = 0x4, offset = 0x4, fixed_abs, tag = 'smem constant byte address 0x4 - core index']
  #allocation1 [shape = 'u32[144,128]{1,0:T(1,128)}', space=vmem, size = 0x12000, scoped, tag = 'internal scratch']
  #allocation2 [shape = 'f32[1,1]{1,0:T(1,128)S(6)}', space=smem, size = 0x200, scoped, tag = 'scoped memory for tpu_custom_call.1']
  %s0 = inlined_call_operand.vmem [shape: f32[2,8], index: 0, kind: input, shape index: {}]
  %s1 = inlined_call_operand.vmem [shape: f32[256,1], index: 1, kind: input, shape index: {}]
  %s2 = inlined_call_operand.vmem [shape: f32[256,1], index: 2, kind: input, shape index: {}]
  %s3 = inlined_call_operand.vmem [shape: f32[256,1], index: 3, kind: input, shape index: {}]
  %s4 = inlined_call_operand.vmem [shape: f32[256,256], index: 4, kind: input, shape index: {}]
  %s5 = inlined_call_operand.vmem [shape: f32[256,1], index: 5, kind: input, shape index: {}]
  %s6 = inlined_call_operand.vmem [shape: f32[256,1], index: 6, kind: input, shape index: {}]
  %s7 = inlined_call_operand.<no memory space> [shape: f32[1,1], index: 7, kind: input, shape index: {}]
  %s8 = inlined_call_operand.hbm [shape: f32[1,8], index: 8, kind: output, shape index: {}]
  %s9 = sld [smem:[#allocation0]]
  $region42: #{tpu_custom_call.1} parent=0
    _
  %s11 = ssub.s32 1, %s9
  %s12 = scalar_select 0, %s11, %s9
  %13 = sst [smem:[#allocation2]] %s7
  $region1: #{tpu_custom_call.1} parent=0
    #allocation3 [shape = 'u8[512]{0}', space=vmem, size = 0x400, scoped, tag = 'output window, operand 0, single buffered']
    #allocation4 [shape = 's32[1]{0}', space=sflag, size = 0x4, scoped, tag = 'scoped memory for tpu_custom_call.1']
    %14 = vsyncpa [#allocation4], 0
    // Predicated region
    $region2: #{tpu_custom_call.1} parent=1 // pred_check
      _
    $region3: #{tpu_custom_call.1} parent=1 // pred_check_branch
      %16 = sbr.rel (0) target = $region5
    $region4: #{tpu_custom_call.1} parent=1 // pred_region
      _
    $region5: #{tpu_custom_call.1} parent=1 // pred_fallthru
      _
    // Predicated region
    $region6: #{tpu_custom_call.1} parent=1 // pred_check
      _
    $region7: #{tpu_custom_call.1} parent=1 // pred_check_branch
      %18 = sbr.rel (0) target = $region9
    $region8: #{tpu_custom_call.1} parent=1 // pred_region
      _
    $region9: #{tpu_custom_call.1} parent=1 // pred_fallthru
      _
    // Predicated region
    $region10: #{tpu_custom_call.1} parent=1 // pred_check
      _
    $region11: #{tpu_custom_call.1} parent=1 // pred_check_branch
      %20 = sbr.rel (0) target = $region13
    $region12: #{tpu_custom_call.1} parent=1 // pred_region
      _
    $region13: #{tpu_custom_call.1} parent=1 // pred_fallthru
      _
    // Predicated region
    $region14: #{tpu_custom_call.1} parent=1 // pred_check
      _
    $region15: #{tpu_custom_call.1} parent=1 // pred_check_branch
      %22 = sbr.rel (0) target = $region17
    $region16: #{tpu_custom_call.1} parent=1 // pred_region
      _
    $region17: #{tpu_custom_call.1} parent=1 // pred_fallthru
      _
    // Predicated region
    $region18: #{tpu_custom_call.1} parent=1 // pred_check
      _
    $region19: #{tpu_custom_call.1} parent=1 // pred_check_branch
      %24 = sbr.rel (0) target = $region21
    $region20: #{tpu_custom_call.1} parent=1 // pred_region
      _
    $region21: #{tpu_custom_call.1} parent=1 // pred_fallthru
      _
    // Predicated region
    $region22: #{tpu_custom_call.1} parent=1 // pred_check
      _
    $region23: #{tpu_custom_call.1} parent=1 // pred_check_branch
      %26 = sbr.rel (0) target = $region25
    $region24: #{tpu_custom_call.1} parent=1 // pred_region
      _
    $region25: #{tpu_custom_call.1} parent=1 // pred_fallthru
      _
    // Predicated region
    $region26: #{tpu_custom_call.1} parent=1 // pred_check
      _
    $region27: #{tpu_custom_call.1} parent=1 // pred_check_branch
      %28 = sbr.rel (0) target = $region29
    $region28: #{tpu_custom_call.1} parent=1 // pred_region
      _
    $region29: #{tpu_custom_call.1} parent=1 // pred_fallthru
      _
    // Predicated region
    $region30: #{tpu_custom_call.1} parent=1 // pred_check
      _
    $region31: #{tpu_custom_call.1} parent=1 // pred_check_branch
      %30 = sbr.rel (0) target = $region33
    $region32: #{tpu_custom_call.1} parent=1 // pred_region
      _
    $region33: #{tpu_custom_call.1} parent=1 // pred_fallthru
      _
    %v31 = vld [vmem:[%s0] sm:$0x1]
    %v32 = vld [vmem:[%s0 + $0x1] sm:$0x1]
    %v33 = vld [vmem:[%s1] sm:$0xff]
    %v34 = vld [vmem:[%s1 + $0x8] sm:$0xff]
    %v35 = vld [vmem:[%s1 + $0x10] sm:$0xff]
    %v36 = vld [vmem:[%s1 + $0x18] sm:$0xff]
    %v37 = vld [vmem:[%s1 + $0x20] sm:$0xff]
    %v38 = vld [vmem:[%s1 + $0x28] sm:$0xff]
    %v39 = vld [vmem:[%s1 + $0x30] sm:$0xff]
    %v40 = vld [vmem:[%s1 + $0x38] sm:$0xff]
    %v41 = vld [vmem:[%s1 + $0x40] sm:$0xff]
    %v42 = vld [vmem:[%s1 + $0x48] sm:$0xff]
    %v43 = vld [vmem:[%s1 + $0x50] sm:$0xff]
    %v44 = vld [vmem:[%s1 + $0x58] sm:$0xff]
    %v45 = vld [vmem:[%s1 + $0x60] sm:$0xff]
    %v46 = vld [vmem:[%s1 + $0x68] sm:$0xff]
    %v47 = vld [vmem:[%s1 + $0x70] sm:$0xff]
    %v48 = vld [vmem:[%s1 + $0x78] sm:$0xff]
    %v49 = vld [vmem:[%s1 + $0x80] sm:$0xff]
    %v50 = vld [vmem:[%s1 + $0x88] sm:$0xff]
    %v51 = vld [vmem:[%s1 + $0x90] sm:$0xff]
    %v52 = vld [vmem:[%s1 + $0x98] sm:$0xff]
    %v53 = vld [vmem:[%s1 + $0xa0] sm:$0xff]
    %v54 = vld [vmem:[%s1 + $0xa8] sm:$0xff]
    %v55 = vld [vmem:[%s1 + $0xb0] sm:$0xff]
    %v56 = vld [vmem:[%s1 + $0xb8] sm:$0xff]
    %v57 = vld [vmem:[%s1 + $0xc0] sm:$0xff]
    %v58 = vld [vmem:[%s1 + $0xc8] sm:$0xff]
    %v59 = vld [vmem:[%s1 + $0xd0] sm:$0xff]
    %v60 = vld [vmem:[%s1 + $0xd8] sm:$0xff]
    %v61 = vld [vmem:[%s1 + $0xe0] sm:$0xff]
    %v62 = vld [vmem:[%s1 + $0xe8] sm:$0xff]
    %v63 = vld [vmem:[%s1 + $0xf0] sm:$0xff]
    %v64 = vld [vmem:[%s1 + $0xf8] sm:$0xff]
    %66 = vset.pattern.permute.xlu0 0
    %67 = vperm.xlu0 %66, %v33
    %v68 = vpop.permute.xlu0 %67
    %71 = vset.pattern.permute.xlu0 0
    %72 = vperm.xlu0 %71, %v34
    %v73 = vpop.permute.xlu0 %72
    %76 = vset.pattern.permute.xlu0 0
    %77 = vperm.xlu0 %76, %v35
    %v78 = vpop.permute.xlu0 %77
    %81 = vset.pattern.permute.xlu0 0
    %82 = vperm.xlu0 %81, %v36
    %v83 = vpop.permute.xlu0 %82
    %86 = vset.pattern.permute.xlu0 0
    %87 = vperm.xlu0 %86, %v37
    %v88 = vpop.permute.xlu0 %87
    %91 = vset.pattern.permute.xlu0 0
    %92 = vperm.xlu0 %91, %v38
    %v93 = vpop.permute.xlu0 %92
    %96 = vset.pattern.permute.xlu0 0
    %97 = vperm.xlu0 %96, %v39
    %v98 = vpop.permute.xlu0 %97
    %101 = vset.pattern.permute.xlu0 0
    %102 = vperm.xlu0 %101, %v40
    %v103 = vpop.permute.xlu0 %102
    %106 = vset.pattern.permute.xlu0 0
    %107 = vperm.xlu0 %106, %v41
    %v108 = vpop.permute.xlu0 %107
    %111 = vset.pattern.permute.xlu0 0
    %112 = vperm.xlu0 %111, %v42
    %v113 = vpop.permute.xlu0 %112
    %116 = vset.pattern.permute.xlu0 0
    %117 = vperm.xlu0 %116, %v43
    %v118 = vpop.permute.xlu0 %117
    %121 = vset.pattern.permute.xlu0 0
    %122 = vperm.xlu0 %121, %v44
    %v123 = vpop.permute.xlu0 %122
    %126 = vset.pattern.permute.xlu0 0
    %127 = vperm.xlu0 %126, %v45
    %v128 = vpop.permute.xlu0 %127
    %131 = vset.pattern.permute.xlu0 0
    %132 = vperm.xlu0 %131, %v46
    %v133 = vpop.permute.xlu0 %132
    %136 = vset.pattern.permute.xlu0 0
    %137 = vperm.xlu0 %136, %v47
    %v138 = vpop.permute.xlu0 %137
    %141 = vset.pattern.permute.xlu0 0
    %142 = vperm.xlu0 %141, %v48
    %v143 = vpop.permute.xlu0 %142
    %146 = vset.pattern.permute.xlu0 0
    %147 = vperm.xlu0 %146, %v49
    %v148 = vpop.permute.xlu0 %147
    %151 = vset.pattern.permute.xlu0 0
    %152 = vperm.xlu0 %151, %v50
    %v153 = vpop.permute.xlu0 %152
    %156 = vset.pattern.permute.xlu0 0
    %157 = vperm.xlu0 %156, %v51
    %v158 = vpop.permute.xlu0 %157
    %161 = vset.pattern.permute.xlu0 0
    %162 = vperm.xlu0 %161, %v52
    %v163 = vpop.permute.xlu0 %162
    %166 = vset.pattern.permute.xlu0 0
    %167 = vperm.xlu0 %166, %v53
    %v168 = vpop.permute.xlu0 %167
    %171 = vset.pattern.permute.xlu0 0
    %172 = vperm.xlu0 %171, %v54
    %v173 = vpop.permute.xlu0 %172
    %176 = vset.pattern.permute.xlu0 0
    %177 = vperm.xlu0 %176, %v55
    %v178 = vpop.permute.xlu0 %177
    %181 = vset.pattern.permute.xlu0 0
    %182 = vperm.xlu0 %181, %v56
    %v183 = vpop.permute.xlu0 %182
    %186 = vset.pattern.permute.xlu0 0
    %187 = vperm.xlu0 %186, %v57
    %v188 = vpop.permute.xlu0 %187
    %191 = vset.pattern.permute.xlu0 0
    %192 = vperm.xlu0 %191, %v58
    %v193 = vpop.permute.xlu0 %192
    %196 = vset.pattern.permute.xlu0 0
    %197 = vperm.xlu0 %196, %v59
    %v198 = vpop.permute.xlu0 %197
    %201 = vset.pattern.permute.xlu0 0
    %202 = vperm.xlu0 %201, %v60
    %v203 = vpop.permute.xlu0 %202
    %206 = vset.pattern.permute.xlu0 0
    %207 = vperm.xlu0 %206, %v61
    %v208 = vpop.permute.xlu0 %207
    %211 = vset.pattern.permute.xlu0 0
    %212 = vperm.xlu0 %211, %v62
    %v213 = vpop.permute.xlu0 %212
    %216 = vset.pattern.permute.xlu0 0
    %217 = vperm.xlu0 %216, %v63
    %v218 = vpop.permute.xlu0 %217
    %221 = vset.pattern.permute.xlu0 0
    %222 = vperm.xlu0 %221, %v64
    %v223 = vpop.permute.xlu0 %222
    %v225 = vlaneseq
    %v226 = vshrl.u32 %v225, 7
    %v227 = vsub.s32 0, %v226
    %v228 = vrot.slane %v31, %v227
    %v229 = vmul.f32 %v68, %v228
    %v230 = vmul.f32 %v73, %v228
    %v231 = vmul.f32 %v78, %v228
    %v232 = vmul.f32 %v83, %v228
    %v233 = vmul.f32 %v88, %v228
    %v234 = vmul.f32 %v93, %v228
    %v235 = vmul.f32 %v98, %v228
    %v236 = vmul.f32 %v103, %v228
    %v237 = vmul.f32 %v108, %v228
    %v238 = vmul.f32 %v113, %v228
    %v239 = vmul.f32 %v118, %v228
    %v240 = vmul.f32 %v123, %v228
    %v241 = vmul.f32 %v128, %v228
    %v242 = vmul.f32 %v133, %v228
    %v243 = vmul.f32 %v138, %v228
    %v244 = vmul.f32 %v143, %v228
    %v245 = vmul.f32 %v148, %v228
    %v246 = vmul.f32 %v153, %v228
    %v247 = vmul.f32 %v158, %v228
    %v248 = vmul.f32 %v163, %v228
    %v249 = vmul.f32 %v168, %v228
    %v250 = vmul.f32 %v173, %v228
    %v251 = vmul.f32 %v178, %v228
    %v252 = vmul.f32 %v183, %v228
    %v253 = vmul.f32 %v188, %v228
    %v254 = vmul.f32 %v193, %v228
    %v255 = vmul.f32 %v198, %v228
    %v256 = vmul.f32 %v203, %v228
    %v257 = vmul.f32 %v208, %v228
    %v258 = vmul.f32 %v213, %v228
    %v259 = vmul.f32 %v218, %v228
    %v260 = vmul.f32 %v223, %v228
    %v261 = vld [vmem:[%s2] sm:$0xff]
    %v262 = vld [vmem:[%s2 + $0x8] sm:$0xff]
    %v263 = vld [vmem:[%s2 + $0x10] sm:$0xff]
    %v264 = vld [vmem:[%s2 + $0x18] sm:$0xff]
    %v265 = vld [vmem:[%s2 + $0x20] sm:$0xff]
    %v266 = vld [vmem:[%s2 + $0x28] sm:$0xff]
    %v267 = vld [vmem:[%s2 + $0x30] sm:$0xff]
    %v268 = vld [vmem:[%s2 + $0x38] sm:$0xff]
    %v269 = vld [vmem:[%s2 + $0x40] sm:$0xff]
    %v270 = vld [vmem:[%s2 + $0x48] sm:$0xff]
    %v271 = vld [vmem:[%s2 + $0x50] sm:$0xff]
    %v272 = vld [vmem:[%s2 + $0x58] sm:$0xff]
    %v273 = vld [vmem:[%s2 + $0x60] sm:$0xff]
    %v274 = vld [vmem:[%s2 + $0x68] sm:$0xff]
    %v275 = vld [vmem:[%s2 + $0x70] sm:$0xff]
    %v276 = vld [vmem:[%s2 + $0x78] sm:$0xff]
    %v277 = vld [vmem:[%s2 + $0x80] sm:$0xff]
    %v278 = vld [vmem:[%s2 + $0x88] sm:$0xff]
    %v279 = vld [vmem:[%s2 + $0x90] sm:$0xff]
    %v280 = vld [vmem:[%s2 + $0x98] sm:$0xff]
    %v281 = vld [vmem:[%s2 + $0xa0] sm:$0xff]
    %v282 = vld [vmem:[%s2 + $0xa8] sm:$0xff]
    %v283 = vld [vmem:[%s2 + $0xb0] sm:$0xff]
    %v284 = vld [vmem:[%s2 + $0xb8] sm:$0xff]
    %v285 = vld [vmem:[%s2 + $0xc0] sm:$0xff]
    %v286 = vld [vmem:[%s2 + $0xc8] sm:$0xff]
    %v287 = vld [vmem:[%s2 + $0xd0] sm:$0xff]
    %v288 = vld [vmem:[%s2 + $0xd8] sm:$0xff]
    %v289 = vld [vmem:[%s2 + $0xe0] sm:$0xff]
    %v290 = vld [vmem:[%s2 + $0xe8] sm:$0xff]
    %v291 = vld [vmem:[%s2 + $0xf0] sm:$0xff]
    %v292 = vld [vmem:[%s2 + $0xf8] sm:$0xff]
    %294 = vset.pattern.permute.xlu0 0
    %295 = vperm.xlu0 %294, %v261
    %v296 = vpop.permute.xlu0 %295
    %299 = vset.pattern.permute.xlu0 0
    %300 = vperm.xlu0 %299, %v262
    %v301 = vpop.permute.xlu0 %300
    %304 = vset.pattern.permute.xlu0 0
    %305 = vperm.xlu0 %304, %v263
    %v306 = vpop.permute.xlu0 %305
    %309 = vset.pattern.permute.xlu0 0
    %310 = vperm.xlu0 %309, %v264
    %v311 = vpop.permute.xlu0 %310
    %314 = vset.pattern.permute.xlu0 0
    %315 = vperm.xlu0 %314, %v265
    %v316 = vpop.permute.xlu0 %315
    %319 = vset.pattern.permute.xlu0 0
    %320 = vperm.xlu0 %319, %v266
    %v321 = vpop.permute.xlu0 %320
    %324 = vset.pattern.permute.xlu0 0
    %325 = vperm.xlu0 %324, %v267
    %v326 = vpop.permute.xlu0 %325
    %329 = vset.pattern.permute.xlu0 0
    %330 = vperm.xlu0 %329, %v268
    %v331 = vpop.permute.xlu0 %330
    %334 = vset.pattern.permute.xlu0 0
    %335 = vperm.xlu0 %334, %v269
    %v336 = vpop.permute.xlu0 %335
    %339 = vset.pattern.permute.xlu0 0
    %340 = vperm.xlu0 %339, %v270
    %v341 = vpop.permute.xlu0 %340
    %344 = vset.pattern.permute.xlu0 0
    %345 = vperm.xlu0 %344, %v271
    %v346 = vpop.permute.xlu0 %345
    %349 = vset.pattern.permute.xlu0 0
    %350 = vperm.xlu0 %349, %v272
    %v351 = vpop.permute.xlu0 %350
    %354 = vset.pattern.permute.xlu0 0
    %355 = vperm.xlu0 %354, %v273
    %v356 = vpop.permute.xlu0 %355
    %359 = vset.pattern.permute.xlu0 0
    %360 = vperm.xlu0 %359, %v274
    %v361 = vpop.permute.xlu0 %360
    %364 = vset.pattern.permute.xlu0 0
    %365 = vperm.xlu0 %364, %v275
    %v366 = vpop.permute.xlu0 %365
    %369 = vset.pattern.permute.xlu0 0
    %370 = vperm.xlu0 %369, %v276
    %v371 = vpop.permute.xlu0 %370
    %374 = vset.pattern.permute.xlu0 0
    %375 = vperm.xlu0 %374, %v277
    %v376 = vpop.permute.xlu0 %375
    %379 = vset.pattern.permute.xlu0 0
    %380 = vperm.xlu0 %379, %v278
    %v381 = vpop.permute.xlu0 %380
    %384 = vset.pattern.permute.xlu0 0
    %385 = vperm.xlu0 %384, %v279
    %v386 = vpop.permute.xlu0 %385
    %389 = vset.pattern.permute.xlu0 0
    %390 = vperm.xlu0 %389, %v280
    %v391 = vpop.permute.xlu0 %390
    %394 = vset.pattern.permute.xlu0 0
    %395 = vperm.xlu0 %394, %v281
    %v396 = vpop.permute.xlu0 %395
    %399 = vset.pattern.permute.xlu0 0
    %400 = vperm.xlu0 %399, %v282
    %v401 = vpop.permute.xlu0 %400
    %404 = vset.pattern.permute.xlu0 0
    %405 = vperm.xlu0 %404, %v283
    %v406 = vpop.permute.xlu0 %405
    %409 = vset.pattern.permute.xlu0 0
    %410 = vperm.xlu0 %409, %v284
    %v411 = vpop.permute.xlu0 %410
    %414 = vset.pattern.permute.xlu0 0
    %415 = vperm.xlu0 %414, %v285
    %v416 = vpop.permute.xlu0 %415
    %419 = vset.pattern.permute.xlu0 0
    %420 = vperm.xlu0 %419, %v286
    %v421 = vpop.permute.xlu0 %420
    %424 = vset.pattern.permute.xlu0 0
    %425 = vperm.xlu0 %424, %v287
    %v426 = vpop.permute.xlu0 %425
    %429 = vset.pattern.permute.xlu0 0
    %430 = vperm.xlu0 %429, %v288
    %v431 = vpop.permute.xlu0 %430
    %434 = vset.pattern.permute.xlu0 0
    %435 = vperm.xlu0 %434, %v289
    %v436 = vpop.permute.xlu0 %435
    %439 = vset.pattern.permute.xlu0 0
    %440 = vperm.xlu0 %439, %v290
    %v441 = vpop.permute.xlu0 %440
    %444 = vset.pattern.permute.xlu0 0
    %445 = vperm.xlu0 %444, %v291
    %v446 = vpop.permute.xlu0 %445
    %449 = vset.pattern.permute.xlu0 0
    %450 = vperm.xlu0 %449, %v292
    %v451 = vpop.permute.xlu0 %450
    %v453 = vlaneseq
    %v454 = vshrl.u32 %v453, 7
    %v455 = vsub.s32 0, %v454
    %v456 = vrot.slane %v32, %v455
    %v457 = vmul.f32 %v296, %v456
    %v458 = vmul.f32 %v301, %v456
    %v459 = vmul.f32 %v306, %v456
    %v460 = vmul.f32 %v311, %v456
    %v461 = vmul.f32 %v316, %v456
    %v462 = vmul.f32 %v321, %v456
    %v463 = vmul.f32 %v326, %v456
    %v464 = vmul.f32 %v331, %v456
    %v465 = vmul.f32 %v336, %v456
    %v466 = vmul.f32 %v341, %v456
    %v467 = vmul.f32 %v346, %v456
    %v468 = vmul.f32 %v351, %v456
    %v469 = vmul.f32 %v356, %v456
    %v470 = vmul.f32 %v361, %v456
    %v471 = vmul.f32 %v366, %v456
    %v472 = vmul.f32 %v371, %v456
    %v473 = vmul.f32 %v376, %v456
    %v474 = vmul.f32 %v381, %v456
    %v475 = vmul.f32 %v386, %v456
    %v476 = vmul.f32 %v391, %v456
    %v477 = vmul.f32 %v396, %v456
    %v478 = vmul.f32 %v401, %v456
    %v479 = vmul.f32 %v406, %v456
    %v480 = vmul.f32 %v411, %v456
    %v481 = vmul.f32 %v416, %v456
    %v482 = vmul.f32 %v421, %v456
    %v483 = vmul.f32 %v426, %v456
    %v484 = vmul.f32 %v431, %v456
    %v485 = vmul.f32 %v436, %v456
    %v486 = vmul.f32 %v441, %v456
    %v487 = vmul.f32 %v446, %v456
    %v488 = vmul.f32 %v451, %v456
    %v489 = vadd.f32 %v229, %v457
    %v490 = vadd.f32 %v230, %v458
    %v491 = vadd.f32 %v231, %v459
    %v492 = vadd.f32 %v232, %v460
    %v493 = vadd.f32 %v233, %v461
    %v494 = vadd.f32 %v234, %v462
    %v495 = vadd.f32 %v235, %v463
    %v496 = vadd.f32 %v236, %v464
    %v497 = vadd.f32 %v237, %v465
    %v498 = vadd.f32 %v238, %v466
    %v499 = vadd.f32 %v239, %v467
    %v500 = vadd.f32 %v240, %v468
    %v501 = vadd.f32 %v241, %v469
    %v502 = vadd.f32 %v242, %v470
    %v503 = vadd.f32 %v243, %v471
    %v504 = vadd.f32 %v244, %v472
    %v505 = vadd.f32 %v245, %v473
    %v506 = vadd.f32 %v246, %v474
    %v507 = vadd.f32 %v247, %v475
    %v508 = vadd.f32 %v248, %v476
    %v509 = vadd.f32 %v249, %v477
    %v510 = vadd.f32 %v250, %v478
    %v511 = vadd.f32 %v251, %v479
    %v512 = vadd.f32 %v252, %v480
    %v513 = vadd.f32 %v253, %v481
    %v514 = vadd.f32 %v254, %v482
    %v515 = vadd.f32 %v255, %v483
    %v516 = vadd.f32 %v256, %v484
    %v517 = vadd.f32 %v257, %v485
    %v518 = vadd.f32 %v258, %v486
    %v519 = vadd.f32 %v259, %v487
    %v520 = vadd.f32 %v260, %v488
    %v521 = vld [vmem:[%s3] sm:$0xff]
    %v522 = vld [vmem:[%s3 + $0x8] sm:$0xff]
    %v523 = vld [vmem:[%s3 + $0x10] sm:$0xff]
    %v524 = vld [vmem:[%s3 + $0x18] sm:$0xff]
    %v525 = vld [vmem:[%s3 + $0x20] sm:$0xff]
    %v526 = vld [vmem:[%s3 + $0x28] sm:$0xff]
    %v527 = vld [vmem:[%s3 + $0x30] sm:$0xff]
    %v528 = vld [vmem:[%s3 + $0x38] sm:$0xff]
    %v529 = vld [vmem:[%s3 + $0x40] sm:$0xff]
    %v530 = vld [vmem:[%s3 + $0x48] sm:$0xff]
    %v531 = vld [vmem:[%s3 + $0x50] sm:$0xff]
    %v532 = vld [vmem:[%s3 + $0x58] sm:$0xff]
    %v533 = vld [vmem:[%s3 + $0x60] sm:$0xff]
    %v534 = vld [vmem:[%s3 + $0x68] sm:$0xff]
    %v535 = vld [vmem:[%s3 + $0x70] sm:$0xff]
    %v536 = vld [vmem:[%s3 + $0x78] sm:$0xff]
    %v537 = vld [vmem:[%s3 + $0x80] sm:$0xff]
    %v538 = vld [vmem:[%s3 + $0x88] sm:$0xff]
    %v539 = vld [vmem:[%s3 + $0x90] sm:$0xff]
    %v540 = vld [vmem:[%s3 + $0x98] sm:$0xff]
    %v541 = vld [vmem:[%s3 + $0xa0] sm:$0xff]
    %v542 = vld [vmem:[%s3 + $0xa8] sm:$0xff]
    %v543 = vld [vmem:[%s3 + $0xb0] sm:$0xff]
    %v544 = vld [vmem:[%s3 + $0xb8] sm:$0xff]
    %v545 = vld [vmem:[%s3 + $0xc0] sm:$0xff]
    %v546 = vld [vmem:[%s3 + $0xc8] sm:$0xff]
    %v547 = vld [vmem:[%s3 + $0xd0] sm:$0xff]
    %v548 = vld [vmem:[%s3 + $0xd8] sm:$0xff]
    %v549 = vld [vmem:[%s3 + $0xe0] sm:$0xff]
    %v550 = vld [vmem:[%s3 + $0xe8] sm:$0xff]
    %v551 = vld [vmem:[%s3 + $0xf0] sm:$0xff]
    %v552 = vld [vmem:[%s3 + $0xf8] sm:$0xff]
    %554 = vset.pattern.permute.xlu0 0
    %555 = vperm.xlu0 %554, %v521
    %v556 = vpop.permute.xlu0 %555
    %559 = vset.pattern.permute.xlu0 0
    %560 = vperm.xlu0 %559, %v522
    %v561 = vpop.permute.xlu0 %560
    %564 = vset.pattern.permute.xlu0 0
    %565 = vperm.xlu0 %564, %v523
    %v566 = vpop.permute.xlu0 %565
    %569 = vset.pattern.permute.xlu0 0
    %570 = vperm.xlu0 %569, %v524
    %v571 = vpop.permute.xlu0 %570
    %574 = vset.pattern.permute.xlu0 0
    %575 = vperm.xlu0 %574, %v525
    %v576 = vpop.permute.xlu0 %575
    %579 = vset.pattern.permute.xlu0 0
    %580 = vperm.xlu0 %579, %v526
    %v581 = vpop.permute.xlu0 %580
    %584 = vset.pattern.permute.xlu0 0
    %585 = vperm.xlu0 %584, %v527
    %v586 = vpop.permute.xlu0 %585
    %589 = vset.pattern.permute.xlu0 0
    %590 = vperm.xlu0 %589, %v528
    %v591 = vpop.permute.xlu0 %590
    %594 = vset.pattern.permute.xlu0 0
    %595 = vperm.xlu0 %594, %v529
    %v596 = vpop.permute.xlu0 %595
    %599 = vset.pattern.permute.xlu0 0
    %600 = vperm.xlu0 %599, %v530
    %v601 = vpop.permute.xlu0 %600
    %604 = vset.pattern.permute.xlu0 0
    %605 = vperm.xlu0 %604, %v531
    %v606 = vpop.permute.xlu0 %605
    %609 = vset.pattern.permute.xlu0 0
    %610 = vperm.xlu0 %609, %v532
    %v611 = vpop.permute.xlu0 %610
    %614 = vset.pattern.permute.xlu0 0
    %615 = vperm.xlu0 %614, %v533
    %v616 = vpop.permute.xlu0 %615
    %619 = vset.pattern.permute.xlu0 0
    %620 = vperm.xlu0 %619, %v534
    %v621 = vpop.permute.xlu0 %620
    %624 = vset.pattern.permute.xlu0 0
    %625 = vperm.xlu0 %624, %v535
    %v626 = vpop.permute.xlu0 %625
    %629 = vset.pattern.permute.xlu0 0
    %630 = vperm.xlu0 %629, %v536
    %v631 = vpop.permute.xlu0 %630
    %634 = vset.pattern.permute.xlu0 0
    %635 = vperm.xlu0 %634, %v537
    %v636 = vpop.permute.xlu0 %635
    %639 = vset.pattern.permute.xlu0 0
    %640 = vperm.xlu0 %639, %v538
    %v641 = vpop.permute.xlu0 %640
    %644 = vset.pattern.permute.xlu0 0
    %645 = vperm.xlu0 %644, %v539
    %v646 = vpop.permute.xlu0 %645
    %649 = vset.pattern.permute.xlu0 0
    %650 = vperm.xlu0 %649, %v540
    %v651 = vpop.permute.xlu0 %650
    %654 = vset.pattern.permute.xlu0 0
    %655 = vperm.xlu0 %654, %v541
    %v656 = vpop.permute.xlu0 %655
    %659 = vset.pattern.permute.xlu0 0
    %660 = vperm.xlu0 %659, %v542
    %v661 = vpop.permute.xlu0 %660
    %664 = vset.pattern.permute.xlu0 0
    %665 = vperm.xlu0 %664, %v543
    %v666 = vpop.permute.xlu0 %665
    %669 = vset.pattern.permute.xlu0 0
    %670 = vperm.xlu0 %669, %v544
    %v671 = vpop.permute.xlu0 %670
    %674 = vset.pattern.permute.xlu0 0
    %675 = vperm.xlu0 %674, %v545
    %v676 = vpop.permute.xlu0 %675
    %679 = vset.pattern.permute.xlu0 0
    %680 = vperm.xlu0 %679, %v546
    %v681 = vpop.permute.xlu0 %680
    %684 = vset.pattern.permute.xlu0 0
    %685 = vperm.xlu0 %684, %v547
    %v686 = vpop.permute.xlu0 %685
    %689 = vset.pattern.permute.xlu0 0
    %690 = vperm.xlu0 %689, %v548
    %v691 = vpop.permute.xlu0 %690
    %694 = vset.pattern.permute.xlu0 0
    %695 = vperm.xlu0 %694, %v549
    %v696 = vpop.permute.xlu0 %695
    %699 = vset.pattern.permute.xlu0 0
    %700 = vperm.xlu0 %699, %v550
    %v701 = vpop.permute.xlu0 %700
    %704 = vset.pattern.permute.xlu0 0
    %705 = vperm.xlu0 %704, %v551
    %v706 = vpop.permute.xlu0 %705
    %709 = vset.pattern.permute.xlu0 0
    %710 = vperm.xlu0 %709, %v552
    %v711 = vpop.permute.xlu0 %710
    %v713 = vadd.f32 %v489, %v556
    %v714 = vadd.f32 %v490, %v561
    %v715 = vadd.f32 %v491, %v566
    %v716 = vadd.f32 %v492, %v571
    %v717 = vadd.f32 %v493, %v576
    %v718 = vadd.f32 %v494, %v581
    %v719 = vadd.f32 %v495, %v586
    %v720 = vadd.f32 %v496, %v591
    %v721 = vadd.f32 %v497, %v596
    %v722 = vadd.f32 %v498, %v601
    %v723 = vadd.f32 %v499, %v606
    %v724 = vadd.f32 %v500, %v611
    %v725 = vadd.f32 %v501, %v616
    %v726 = vadd.f32 %v502, %v621
    %v727 = vadd.f32 %v503, %v626
    %v728 = vadd.f32 %v504, %v631
    %v729 = vadd.f32 %v505, %v636
    %v730 = vadd.f32 %v506, %v641
    %v731 = vadd.f32 %v507, %v646
    %v732 = vadd.f32 %v508, %v651
    %v733 = vadd.f32 %v509, %v656
    %v734 = vadd.f32 %v510, %v661
    %v735 = vadd.f32 %v511, %v666
    %v736 = vadd.f32 %v512, %v671
    %v737 = vadd.f32 %v513, %v676
    %v738 = vadd.f32 %v514, %v681
    %v739 = vadd.f32 %v515, %v686
    %v740 = vadd.f32 %v516, %v691
    %v741 = vadd.f32 %v517, %v696
    %v742 = vadd.f32 %v518, %v701
    %v743 = vadd.f32 %v519, %v706
    %v744 = vadd.f32 %v520, %v711
    %v745 = vmul.f32 %v713, 0.2
    %v746 = vmul.f32 %v714, 0.2
    %v747 = vmul.f32 %v715, 0.2
    %v748 = vmul.f32 %v716, 0.2
    %v749 = vmul.f32 %v717, 0.2
    %v750 = vmul.f32 %v718, 0.2
    %v751 = vmul.f32 %v719, 0.2
    %v752 = vmul.f32 %v720, 0.2
    %v753 = vmul.f32 %v721, 0.2
    %v754 = vmul.f32 %v722, 0.2
    %v755 = vmul.f32 %v723, 0.2
    %v756 = vmul.f32 %v724, 0.2
    %v757 = vmul.f32 %v725, 0.2
    %v758 = vmul.f32 %v726, 0.2
    %v759 = vmul.f32 %v727, 0.2
    %v760 = vmul.f32 %v728, 0.2
    %v761 = vmul.f32 %v729, 0.2
    %v762 = vmul.f32 %v730, 0.2
    %v763 = vmul.f32 %v731, 0.2
    %v764 = vmul.f32 %v732, 0.2
    %v765 = vmul.f32 %v733, 0.2
    %v766 = vmul.f32 %v734, 0.2
    %v767 = vmul.f32 %v735, 0.2
    %v768 = vmul.f32 %v736, 0.2
    %v769 = vmul.f32 %v737, 0.2
    %v770 = vmul.f32 %v738, 0.2
    %v771 = vmul.f32 %v739, 0.2
    %v772 = vmul.f32 %v740, 0.2
    %v773 = vmul.f32 %v741, 0.2
    %v774 = vmul.f32 %v742, 0.2
    %v775 = vmul.f32 %v743, 0.2
    %v776 = vmul.f32 %v744, 0.2
    %v777 = vmax.f32 %v713, %v745
    %v778 = vmax.f32 %v714, %v746
    %v779 = vmax.f32 %v715, %v747
    %v780 = vmax.f32 %v716, %v748
    %v781 = vmax.f32 %v717, %v749
    %v782 = vmax.f32 %v718, %v750
    %v783 = vmax.f32 %v719, %v751
    %v784 = vmax.f32 %v720, %v752
    %v785 = vmax.f32 %v721, %v753
    %v786 = vmax.f32 %v722, %v754
    %v787 = vmax.f32 %v723, %v755
    %v788 = vmax.f32 %v724, %v756
    %v789 = vmax.f32 %v725, %v757
    %v790 = vmax.f32 %v726, %v758
    %v791 = vmax.f32 %v727, %v759
    %v792 = vmax.f32 %v728, %v760
    %v793 = vmax.f32 %v729, %v761
    %v794 = vmax.f32 %v730, %v762
    %v795 = vmax.f32 %v731, %v763
    %v796 = vmax.f32 %v732, %v764
    %v797 = vmax.f32 %v733, %v765
    %v798 = vmax.f32 %v734, %v766
    %v799 = vmax.f32 %v735, %v767
    %v800 = vmax.f32 %v736, %v768
    %v801 = vmax.f32 %v737, %v769
    %v802 = vmax.f32 %v738, %v770
    %v803 = vmax.f32 %v739, %v771
    %v804 = vmax.f32 %v740, %v772
    %v805 = vmax.f32 %v741, %v773
    %v806 = vmax.f32 %v742, %v774
    %v807 = vmax.f32 %v743, %v775
    %v808 = vmax.f32 %v744, %v776
    %v809 = vld [vmem:[%s4] sm:$0xff]
    %v810 = vld [vmem:[%s4 + $0x8] sm:$0xff]
    %v811 = vld [vmem:[%s4 + $0x10] sm:$0xff]
    %v812 = vld [vmem:[%s4 + $0x18] sm:$0xff]
    %v813 = vld [vmem:[%s4 + $0x20] sm:$0xff]
    %v814 = vld [vmem:[%s4 + $0x28] sm:$0xff]
    %v815 = vld [vmem:[%s4 + $0x30] sm:$0xff]
    %v816 = vld [vmem:[%s4 + $0x38] sm:$0xff]
    %v817 = vld [vmem:[%s4 + $0x40] sm:$0xff]
    %v818 = vld [vmem:[%s4 + $0x48] sm:$0xff]
    %v819 = vld [vmem:[%s4 + $0x50] sm:$0xff]
    %v820 = vld [vmem:[%s4 + $0x58] sm:$0xff]
    %v821 = vld [vmem:[%s4 + $0x60] sm:$0xff]
    %v822 = vld [vmem:[%s4 + $0x68] sm:$0xff]
    %v823 = vld [vmem:[%s4 + $0x70] sm:$0xff]
    %v824 = vld [vmem:[%s4 + $0x78] sm:$0xff]
    %v825 = vld [vmem:[%s4 + $0x80] sm:$0xff]
    %v826 = vld [vmem:[%s4 + $0x88] sm:$0xff]
    %v827 = vld [vmem:[%s4 + $0x90] sm:$0xff]
    %v828 = vld [vmem:[%s4 + $0x98] sm:$0xff]
    %v829 = vld [vmem:[%s4 + $0xa0] sm:$0xff]
    %v830 = vld [vmem:[%s4 + $0xa8] sm:$0xff]
    %v831 = vld [vmem:[%s4 + $0xb0] sm:$0xff]
    %v832 = vld [vmem:[%s4 + $0xb8] sm:$0xff]
    %v833 = vld [vmem:[%s4 + $0xc0] sm:$0xff]
    %v834 = vld [vmem:[%s4 + $0xc8] sm:$0xff]
    %v835 = vld [vmem:[%s4 + $0xd0] sm:$0xff]
    %v836 = vld [vmem:[%s4 + $0xd8] sm:$0xff]
    %v837 = vld [vmem:[%s4 + $0xe0] sm:$0xff]
    %v838 = vld [vmem:[%s4 + $0xe8] sm:$0xff]
    %v839 = vld [vmem:[%s4 + $0xf0] sm:$0xff]
    %v840 = vld [vmem:[%s4 + $0xf8] sm:$0xff]
    %v841 = vld [vmem:[%s4 + $0x100] sm:$0xff]
    %v842 = vld [vmem:[%s4 + $0x108] sm:$0xff]
    %v843 = vld [vmem:[%s4 + $0x110] sm:$0xff]
    %v844 = vld [vmem:[%s4 + $0x118] sm:$0xff]
    %v845 = vld [vmem:[%s4 + $0x120] sm:$0xff]
    %v846 = vld [vmem:[%s4 + $0x128] sm:$0xff]
    %v847 = vld [vmem:[%s4 + $0x130] sm:$0xff]
    %v848 = vld [vmem:[%s4 + $0x138] sm:$0xff]
    %v849 = vld [vmem:[%s4 + $0x140] sm:$0xff]
    %v850 = vld [vmem:[%s4 + $0x148] sm:$0xff]
    %v851 = vld [vmem:[%s4 + $0x150] sm:$0xff]
    %v852 = vld [vmem:[%s4 + $0x158] sm:$0xff]
    %v853 = vld [vmem:[%s4 + $0x160] sm:$0xff]
    %v854 = vld [vmem:[%s4 + $0x168] sm:$0xff]
    %v855 = vld [vmem:[%s4 + $0x170] sm:$0xff]
    %v856 = vld [vmem:[%s4 + $0x178] sm:$0xff]
    %v857 = vld [vmem:[%s4 + $0x180] sm:$0xff]
    %v858 = vld [vmem:[%s4 + $0x188] sm:$0xff]
    %v859 = vld [vmem:[%s4 + $0x190] sm:$0xff]
    %v860 = vld [vmem:[%s4 + $0x198] sm:$0xff]
    %v861 = vld [vmem:[%s4 + $0x1a0] sm:$0xff]
    %v862 = vld [vmem:[%s4 + $0x1a8] sm:$0xff]
    %v863 = vld [vmem:[%s4 + $0x1b0] sm:$0xff]
    %v864 = vld [vmem:[%s4 + $0x1b8] sm:$0xff]
    %v865 = vld [vmem:[%s4 + $0x1c0] sm:$0xff]
    %v866 = vld [vmem:[%s4 + $0x1c8] sm:$0xff]
    %v867 = vld [vmem:[%s4 + $0x1d0] sm:$0xff]
    %v868 = vld [vmem:[%s4 + $0x1d8] sm:$0xff]
    %v869 = vld [vmem:[%s4 + $0x1e0] sm:$0xff]
    %v870 = vld [vmem:[%s4 + $0x1e8] sm:$0xff]
    %v871 = vld [vmem:[%s4 + $0x1f0] sm:$0xff]
    %v872 = vld [vmem:[%s4 + $0x1f8] sm:$0xff]
    %v873 = vld [vmem:[%s5] sm:$0xff]
    %v874 = vld [vmem:[%s5 + $0x8] sm:$0xff]
    %v875 = vld [vmem:[%s5 + $0x10] sm:$0xff]
    %v876 = vld [vmem:[%s5 + $0x18] sm:$0xff]
    %v877 = vld [vmem:[%s5 + $0x20] sm:$0xff]
    %v878 = vld [vmem:[%s5 + $0x28] sm:$0xff]
    %v879 = vld [vmem:[%s5 + $0x30] sm:$0xff]
    %v880 = vld [vmem:[%s5 + $0x38] sm:$0xff]
    %v881 = vld [vmem:[%s5 + $0x40] sm:$0xff]
    %v882 = vld [vmem:[%s5 + $0x48] sm:$0xff]
    %v883 = vld [vmem:[%s5 + $0x50] sm:$0xff]
    %v884 = vld [vmem:[%s5 + $0x58] sm:$0xff]
    %v885 = vld [vmem:[%s5 + $0x60] sm:$0xff]
    %v886 = vld [vmem:[%s5 + $0x68] sm:$0xff]
    %v887 = vld [vmem:[%s5 + $0x70] sm:$0xff]
    %v888 = vld [vmem:[%s5 + $0x78] sm:$0xff]
    %v889 = vld [vmem:[%s5 + $0x80] sm:$0xff]
    %v890 = vld [vmem:[%s5 + $0x88] sm:$0xff]
    %v891 = vld [vmem:[%s5 + $0x90] sm:$0xff]
    %v892 = vld [vmem:[%s5 + $0x98] sm:$0xff]
    %v893 = vld [vmem:[%s5 + $0xa0] sm:$0xff]
    %v894 = vld [vmem:[%s5 + $0xa8] sm:$0xff]
    %v895 = vld [vmem:[%s5 + $0xb0] sm:$0xff]
    %v896 = vld [vmem:[%s5 + $0xb8] sm:$0xff]
    %v897 = vld [vmem:[%s5 + $0xc0] sm:$0xff]
    %v898 = vld [vmem:[%s5 + $0xc8] sm:$0xff]
    %v899 = vld [vmem:[%s5 + $0xd0] sm:$0xff]
    %v900 = vld [vmem:[%s5 + $0xd8] sm:$0xff]
    %v901 = vld [vmem:[%s5 + $0xe0] sm:$0xff]
    %v902 = vld [vmem:[%s5 + $0xe8] sm:$0xff]
    %v903 = vld [vmem:[%s5 + $0xf0] sm:$0xff]
    %v904 = vld [vmem:[%s5 + $0xf8] sm:$0xff]
    %906 = vset.pattern.permute.xlu0 0
    %907 = vperm.xlu0 %906, %v873
    %v908 = vpop.permute.xlu0 %907
    %911 = vset.pattern.permute.xlu0 0
    %912 = vperm.xlu0 %911, %v874
    %v913 = vpop.permute.xlu0 %912
    %916 = vset.pattern.permute.xlu0 0
    %917 = vperm.xlu0 %916, %v875
    %v918 = vpop.permute.xlu0 %917
    %921 = vset.pattern.permute.xlu0 0
    %922 = vperm.xlu0 %921, %v876
    %v923 = vpop.permute.xlu0 %922
    %926 = vset.pattern.permute.xlu0 0
    %927 = vperm.xlu0 %926, %v877
    %v928 = vpop.permute.xlu0 %927
    %931 = vset.pattern.permute.xlu0 0
    %932 = vperm.xlu0 %931, %v878
    %v933 = vpop.permute.xlu0 %932
    %936 = vset.pattern.permute.xlu0 0
    %937 = vperm.xlu0 %936, %v879
    %v938 = vpop.permute.xlu0 %937
    %941 = vset.pattern.permute.xlu0 0
    %942 = vperm.xlu0 %941, %v880
    %v943 = vpop.permute.xlu0 %942
    %946 = vset.pattern.permute.xlu0 0
    %947 = vperm.xlu0 %946, %v881
    %v948 = vpop.permute.xlu0 %947
    %951 = vset.pattern.permute.xlu0 0
    %952 = vperm.xlu0 %951, %v882
    %v953 = vpop.permute.xlu0 %952
    %956 = vset.pattern.permute.xlu0 0
    %957 = vperm.xlu0 %956, %v883
    %v958 = vpop.permute.xlu0 %957
    %961 = vset.pattern.permute.xlu0 0
    %962 = vperm.xlu0 %961, %v884
    %v963 = vpop.permute.xlu0 %962
    %966 = vset.pattern.permute.xlu0 0
    %967 = vperm.xlu0 %966, %v885
    %v968 = vpop.permute.xlu0 %967
    %971 = vset.pattern.permute.xlu0 0
    %972 = vperm.xlu0 %971, %v886
    %v973 = vpop.permute.xlu0 %972
    %976 = vset.pattern.permute.xlu0 0
    %977 = vperm.xlu0 %976, %v887
    %v978 = vpop.permute.xlu0 %977
    %981 = vset.pattern.permute.xlu0 0
    %982 = vperm.xlu0 %981, %v888
    %v983 = vpop.permute.xlu0 %982
    %986 = vset.pattern.permute.xlu0 0
    %987 = vperm.xlu0 %986, %v889
    %v988 = vpop.permute.xlu0 %987
    %991 = vset.pattern.permute.xlu0 0
    %992 = vperm.xlu0 %991, %v890
    %v993 = vpop.permute.xlu0 %992
    %996 = vset.pattern.permute.xlu0 0
    %997 = vperm.xlu0 %996, %v891
    %v998 = vpop.permute.xlu0 %997
    %1001 = vset.pattern.permute.xlu0 0
    %1002 = vperm.xlu0 %1001, %v892
    %v1003 = vpop.permute.xlu0 %1002
    %1006 = vset.pattern.permute.xlu0 0
    %1007 = vperm.xlu0 %1006, %v893
    %v1008 = vpop.permute.xlu0 %1007
    %1011 = vset.pattern.permute.xlu0 0
    %1012 = vperm.xlu0 %1011, %v894
    %v1013 = vpop.permute.xlu0 %1012
    %1016 = vset.pattern.permute.xlu0 0
    %1017 = vperm.xlu0 %1016, %v895
    %v1018 = vpop.permute.xlu0 %1017
    %1021 = vset.pattern.permute.xlu0 0
    %1022 = vperm.xlu0 %1021, %v896
    %v1023 = vpop.permute.xlu0 %1022
    %1026 = vset.pattern.permute.xlu0 0
    %1027 = vperm.xlu0 %1026, %v897
    %v1028 = vpop.permute.xlu0 %1027
    %1031 = vset.pattern.permute.xlu0 0
    %1032 = vperm.xlu0 %1031, %v898
    %v1033 = vpop.permute.xlu0 %1032
    %1036 = vset.pattern.permute.xlu0 0
    %1037 = vperm.xlu0 %1036, %v899
    %v1038 = vpop.permute.xlu0 %1037
    %1041 = vset.pattern.permute.xlu0 0
    %1042 = vperm.xlu0 %1041, %v900
    %v1043 = vpop.permute.xlu0 %1042
    %1046 = vset.pattern.permute.xlu0 0
    %1047 = vperm.xlu0 %1046, %v901
    %v1048 = vpop.permute.xlu0 %1047
    %1051 = vset.pattern.permute.xlu0 0
    %1052 = vperm.xlu0 %1051, %v902
    %v1053 = vpop.permute.xlu0 %1052
    %1056 = vset.pattern.permute.xlu0 0
    %1057 = vperm.xlu0 %1056, %v903
    %v1058 = vpop.permute.xlu0 %1057
    %1061 = vset.pattern.permute.xlu0 0
    %1062 = vperm.xlu0 %1061, %v904
    %v1063 = vpop.permute.xlu0 %1062
    %1065 = vmatprep.subr.mxu0 0.0
    %1066 = vmatpush1.msra.mxu0 %v777
    %1067 = vmatprep.subr.mxu0 0.0
    %1068 = vmatpush1.msra.mxu0 %v778
    %1069 = vmatprep.subr.mxu0 0.0
    %1070 = vmatpush1.msra.mxu0 %v779
    %1071 = vmatprep.subr.mxu0 0.0
    %1072 = vmatpush1.msra.mxu0 %v780
    %1073 = vmatprep.subr.mxu0 0.0
    %1074 = vmatpush1.msra.mxu0 %v781
    %1075 = vmatprep.subr.mxu0 0.0
    %1076 = vmatpush1.msra.mxu0 %v782
    %1077 = vmatprep.subr.mxu0 0.0
    %1078 = vmatpush1.msra.mxu0 %v783
    %1079 = vmatprep.subr.mxu0 0.0
    %1080 = vmatpush1.msra.mxu0 %v784
    %1081 = vmatprep.subr.mxu0 0.0
    %1082 = vmatpush1.msra.mxu0 %v785
    %1083 = vmatprep.subr.mxu0 0.0
    %1084 = vmatpush1.msra.mxu0 %v786
    %1085 = vmatprep.subr.mxu0 0.0
    %1086 = vmatpush1.msra.mxu0 %v787
    %1087 = vmatprep.subr.mxu0 0.0
    %1088 = vmatpush1.msra.mxu0 %v788
    %1089 = vmatprep.subr.mxu0 0.0
    %1090 = vmatpush1.msra.mxu0 %v789
    %1091 = vmatprep.subr.mxu0 0.0
    %1092 = vmatpush1.msra.mxu0 %v790
    %1093 = vmatprep.subr.mxu0 0.0
    %1094 = vmatpush1.msra.mxu0 %v791
    %1095 = vmatprep.subr.mxu0 0.0
    %1096 = vmatpush1.msra.mxu0 %v792
    %1097 = vmatprep.subr.mxu0 0.0
    %1098 = vmatpush1.msra.mxu0 %v793
    %1099 = vmatprep.subr.mxu0 0.0
    %1100 = vmatpush1.msra.mxu0 %v794
    %1101 = vmatprep.subr.mxu0 0.0
    %1102 = vmatpush1.msra.mxu0 %v795
    %1103 = vmatprep.subr.mxu0 0.0
    %1104 = vmatpush1.msra.mxu0 %v796
    %1105 = vmatprep.subr.mxu0 0.0
    %1106 = vmatpush1.msra.mxu0 %v797
    %1107 = vmatprep.subr.mxu0 0.0
    %1108 = vmatpush1.msra.mxu0 %v798
    %1109 = vmatprep.subr.mxu0 0.0
    %1110 = vmatpush1.msra.mxu0 %v799
    %1111 = vmatprep.subr.mxu0 0.0
    %1112 = vmatpush1.msra.mxu0 %v800
    %1113 = vmatprep.subr.mxu0 0.0
    %1114 = vmatpush1.msra.mxu0 %v801
    %1115 = vmatprep.subr.mxu0 0.0
    %1116 = vmatpush1.msra.mxu0 %v802
    %1117 = vmatprep.subr.mxu0 0.0
    %1118 = vmatpush1.msra.mxu0 %v803
    %1119 = vmatprep.subr.mxu0 0.0
    %1120 = vmatpush1.msra.mxu0 %v804
    %1121 = vmatprep.subr.mxu0 0.0
    %1122 = vmatpush1.msra.mxu0 %v805
    %1123 = vmatprep.subr.mxu0 0.0
    %1124 = vmatpush1.msra.mxu0 %v806
    %1125 = vmatprep.subr.mxu0 0.0
    %1126 = vmatpush1.msra.mxu0 %v807
    %1127 = vmatprep.subr.mxu0 0.0
    %1128 = vmatpush1.msra.mxu0 %v808
    %1129 = vmatprep.mubr.f32.mxu0 %v810
    %1130 = vmatmul.mubr.f32.gmra.mrb[0].mxu0 %v809
    %v1131 = vpop.f32.mrb[0].mxu0
    %v1132 = vadd.f32 %v908, %v1131
    %v1133 = vpop.f32.mrb[0].mxu0
    %1134 = vmatprep.mubr.f32.mxu0 %v812
    %1135 = vmatmul.mubr.f32.gmra.mrb[0].mxu0 %v811
    %v1136 = vpop.f32.mrb[0].mxu0
    %v1137 = vadd.f32 %v913, %v1136
    %v1138 = vpop.f32.mrb[0].mxu0
    %1139 = vmatprep.mubr.f32.mxu0 %v814
    %1140 = vmatmul.mubr.f32.gmra.mrb[0].mxu0 %v813
    %v1141 = vpop.f32.mrb[0].mxu0
    %v1142 = vadd.f32 %v918, %v1141
    %v1143 = vpop.f32.mrb[0].mxu0
    %1144 = vmatprep.mubr.f32.mxu0 %v816
    %1145 = vmatmul.mubr.f32.gmra.mrb[0].mxu0 %v815
    %v1146 = vpop.f32.mrb[0].mxu0
    %v1147 = vadd.f32 %v923, %v1146
    %v1148 = vpop.f32.mrb[0].mxu0
    %1149 = vmatprep.mubr.f32.mxu0 %v818
    %1150 = vmatmul.mubr.f32.gmra.mrb[0].mxu0 %v817
    %v1151 = vpop.f32.mrb[0].mxu0
    %v1152 = vadd.f32 %v928, %v1151
    %v1153 = vpop.f32.mrb[0].mxu0
    %1154 = vmatprep.mubr.f32.mxu0 %v820
    %1155 = vmatmul.mubr.f32.gmra.mrb[0].mxu0 %v819
    %v1156 = vpop.f32.mrb[0].mxu0
    %v1157 = vadd.f32 %v933, %v1156
    %v1158 = vpop.f32.mrb[0].mxu0
    %1159 = vmatprep.mubr.f32.mxu0 %v822
    %1160 = vmatmul.mubr.f32.gmra.mrb[0].mxu0 %v821
    %v1161 = vpop.f32.mrb[0].mxu0
    %v1162 = vadd.f32 %v938, %v1161
    %v1163 = vpop.f32.mrb[0].mxu0
    %1164 = vmatprep.mubr.f32.mxu0 %v824
    %1165 = vmatmul.mubr.f32.gmra.mrb[0].mxu0 %v823
    %v1166 = vpop.f32.mrb[0].mxu0
    %v1167 = vadd.f32 %v943, %v1166
    %v1168 = vpop.f32.mrb[0].mxu0
    %1169 = vmatprep.mubr.f32.mxu0 %v826
    %1170 = vmatmul.mubr.f32.gmra.mrb[0].mxu0 %v825
    %v1171 = vpop.f32.mrb[0].mxu0
    %v1172 = vadd.f32 %v948, %v1171
    %v1173 = vpop.f32.mrb[0].mxu0
    %1174 = vmatprep.mubr.f32.mxu0 %v828
    %1175 = vmatmul.mubr.f32.gmra.mrb[0].mxu0 %v827
    %v1176 = vpop.f32.mrb[0].mxu0
    %v1177 = vadd.f32 %v953, %v1176
    %v1178 = vpop.f32.mrb[0].mxu0
    %1179 = vmatprep.mubr.f32.mxu0 %v830
    %1180 = vmatmul.mubr.f32.gmra.mrb[0].mxu0 %v829
    %v1181 = vpop.f32.mrb[0].mxu0
    %v1182 = vadd.f32 %v958, %v1181
    %v1183 = vpop.f32.mrb[0].mxu0
    %1184 = vmatprep.mubr.f32.mxu0 %v832
    %1185 = vmatmul.mubr.f32.gmra.mrb[0].mxu0 %v831
    %v1186 = vpop.f32.mrb[0].mxu0
    %v1187 = vadd.f32 %v963, %v1186
    %v1188 = vpop.f32.mrb[0].mxu0
    %1189 = vmatprep.mubr.f32.mxu0 %v834
    %1190 = vmatmul.mubr.f32.gmra.mrb[0].mxu0 %v833
    %v1191 = vpop.f32.mrb[0].mxu0
    %v1192 = vadd.f32 %v968, %v1191
    %v1193 = vpop.f32.mrb[0].mxu0
    %1194 = vmatprep.mubr.f32.mxu0 %v836
    %1195 = vmatmul.mubr.f32.gmra.mrb[0].mxu0 %v835
    %v1196 = vpop.f32.mrb[0].mxu0
    %v1197 = vadd.f32 %v973, %v1196
    %v1198 = vpop.f32.mrb[0].mxu0
    %1199 = vmatprep.mubr.f32.mxu0 %v838
    %1200 = vmatmul.mubr.f32.gmra.mrb[0].mxu0 %v837
    %v1201 = vpop.f32.mrb[0].mxu0
    %v1202 = vadd.f32 %v978, %v1201
    %v1203 = vpop.f32.mrb[0].mxu0
    %1204 = vmatprep.mubr.f32.mxu0 %v840
    %1205 = vmatmul.mubr.f32.gmra.mrb[0].mxu0 %v839
    %v1206 = vpop.f32.mrb[0].mxu0
    %v1207 = vadd.f32 %v983, %v1206
    %v1208 = vpop.f32.mrb[0].mxu0
    %1209 = vmatprep.mubr.f32.mxu0 %v842
    %1210 = vmatmul.mubr.f32.gmra.mrb[0].mxu0 %v841
    %v1211 = vpop.f32.mrb[0].mxu0
    %v1212 = vadd.f32 %v988, %v1211
    %v1213 = vpop.f32.mrb[0].mxu0
    %1214 = vmatprep.mubr.f32.mxu0 %v844
    %1215 = vmatmul.mubr.f32.gmra.mrb[0].mxu0 %v843
    %v1216 = vpop.f32.mrb[0].mxu0
    %v1217 = vadd.f32 %v993, %v1216
    %v1218 = vpop.f32.mrb[0].mxu0
    %1219 = vmatprep.mubr.f32.mxu0 %v846
    %1220 = vmatmul.mubr.f32.gmra.mrb[0].mxu0 %v845
    %v1221 = vpop.f32.mrb[0].mxu0
    %v1222 = vadd.f32 %v998, %v1221
    %v1223 = vpop.f32.mrb[0].mxu0
    %1224 = vmatprep.mubr.f32.mxu0 %v848
    %1225 = vmatmul.mubr.f32.gmra.mrb[0].mxu0 %v847
    %v1226 = vpop.f32.mrb[0].mxu0
    %v1227 = vadd.f32 %v1003, %v1226
    %v1228 = vpop.f32.mrb[0].mxu0
    %1229 = vmatprep.mubr.f32.mxu0 %v850
    %1230 = vmatmul.mubr.f32.gmra.mrb[0].mxu0 %v849
    %v1231 = vpop.f32.mrb[0].mxu0
    %v1232 = vadd.f32 %v1008, %v1231
    %v1233 = vpop.f32.mrb[0].mxu0
    %1234 = vmatprep.mubr.f32.mxu0 %v852
    %1235 = vmatmul.mubr.f32.gmra.mrb[0].mxu0 %v851
    %v1236 = vpop.f32.mrb[0].mxu0
    %v1237 = vadd.f32 %v1013, %v1236
    %v1238 = vpop.f32.mrb[0].mxu0
    %1239 = vmatprep.mubr.f32.mxu0 %v854
    %1240 = vmatmul.mubr.f32.gmra.mrb[0].mxu0 %v853
    %v1241 = vpop.f32.mrb[0].mxu0
    %v1242 = vadd.f32 %v1018, %v1241
    %v1243 = vpop.f32.mrb[0].mxu0
    %1244 = vmatprep.mubr.f32.mxu0 %v856
    %1245 = vmatmul.mubr.f32.gmra.mrb[0].mxu0 %v855
    %v1246 = vpop.f32.mrb[0].mxu0
    %v1247 = vadd.f32 %v1023, %v1246
    %v1248 = vpop.f32.mrb[0].mxu0
    %1249 = vmatprep.mubr.f32.mxu0 %v858
    %1250 = vmatmul.mubr.f32.gmra.mrb[0].mxu0 %v857
    %v1251 = vpop.f32.mrb[0].mxu0
    %v1252 = vadd.f32 %v1028, %v1251
    %v1253 = vpop.f32.mrb[0].mxu0
    %1254 = vmatprep.mubr.f32.mxu0 %v860
    %1255 = vmatmul.mubr.f32.gmra.mrb[0].mxu0 %v859
    %v1256 = vpop.f32.mrb[0].mxu0
    %v1257 = vadd.f32 %v1033, %v1256
    %v1258 = vpop.f32.mrb[0].mxu0
    %1259 = vmatprep.mubr.f32.mxu0 %v862
    %1260 = vmatmul.mubr.f32.gmra.mrb[0].mxu0 %v861
    %v1261 = vpop.f32.mrb[0].mxu0
    %v1262 = vadd.f32 %v1038, %v1261
    %v1263 = vpop.f32.mrb[0].mxu0
    %1264 = vmatprep.mubr.f32.mxu0 %v864
    %1265 = vmatmul.mubr.f32.gmra.mrb[0].mxu0 %v863
    %v1266 = vpop.f32.mrb[0].mxu0
    %v1267 = vadd.f32 %v1043, %v1266
    %v1268 = vpop.f32.mrb[0].mxu0
    %1269 = vmatprep.mubr.f32.mxu0 %v866
    %1270 = vmatmul.mubr.f32.gmra.mrb[0].mxu0 %v865
    %v1271 = vpop.f32.mrb[0].mxu0
    %v1272 = vadd.f32 %v1048, %v1271
    %v1273 = vpop.f32.mrb[0].mxu0
    %1274 = vmatprep.mubr.f32.mxu0 %v868
    %1275 = vmatmul.mubr.f32.gmra.mrb[0].mxu0 %v867
    %v1276 = vpop.f32.mrb[0].mxu0
    %v1277 = vadd.f32 %v1053, %v1276
    %v1278 = vpop.f32.mrb[0].mxu0
    %1279 = vmatprep.mubr.f32.mxu0 %v870
    %1280 = vmatmul.mubr.f32.gmra.mrb[0].mxu0 %v869
    %v1281 = vpop.f32.mrb[0].mxu0
    %v1282 = vadd.f32 %v1058, %v1281
    %v1283 = vpop.f32.mrb[0].mxu0
    %1284 = vmatprep.mubr.f32.mxu0 %v872
    %1285 = vmatmul.mubr.f32.gmra.mrb[0].mxu0 %v871
    %v1286 = vpop.f32.mrb[0].mxu0
    %v1287 = vadd.f32 %v1063, %v1286
    %v1288 = vpop.f32.mrb[0].mxu0
    %1289 = vdwg.mxu0
    %v1290 = vmul.f32 %v1132, 0.2
    %v1291 = vmul.f32 %v1137, 0.2
    %v1292 = vmul.f32 %v1142, 0.2
    %v1293 = vmul.f32 %v1147, 0.2
    %v1294 = vmul.f32 %v1152, 0.2
    %v1295 = vmul.f32 %v1157, 0.2
    %v1296 = vmul.f32 %v1162, 0.2
    %v1297 = vmul.f32 %v1167, 0.2
    %v1298 = vmul.f32 %v1172, 0.2
    %v1299 = vmul.f32 %v1177, 0.2
    %v1300 = vmul.f32 %v1182, 0.2
    %v1301 = vmul.f32 %v1187, 0.2
    %v1302 = vmul.f32 %v1192, 0.2
    %v1303 = vmul.f32 %v1197, 0.2
    %v1304 = vmul.f32 %v1202, 0.2
    %v1305 = vmul.f32 %v1207, 0.2
    %v1306 = vmul.f32 %v1212, 0.2
    %v1307 = vmul.f32 %v1217, 0.2
    %v1308 = vmul.f32 %v1222, 0.2
    %v1309 = vmul.f32 %v1227, 0.2
    %v1310 = vmul.f32 %v1232, 0.2
    %v1311 = vmul.f32 %v1237, 0.2
    %v1312 = vmul.f32 %v1242, 0.2
    %v1313 = vmul.f32 %v1247, 0.2
    %v1314 = vmul.f32 %v1252, 0.2
    %v1315 = vmul.f32 %v1257, 0.2
    %v1316 = vmul.f32 %v1262, 0.2
    %v1317 = vmul.f32 %v1267, 0.2
    %v1318 = vmul.f32 %v1272, 0.2
    %v1319 = vmul.f32 %v1277, 0.2
    %v1320 = vmul.f32 %v1282, 0.2
    %v1321 = vmul.f32 %v1287, 0.2
    %v1322 = vmax.f32 %v1132, %v1290
    %v1323 = vmax.f32 %v1137, %v1291
    %v1324 = vmax.f32 %v1142, %v1292
    %v1325 = vmax.f32 %v1147, %v1293
    %v1326 = vmax.f32 %v1152, %v1294
    %v1327 = vmax.f32 %v1157, %v1295
    %v1328 = vmax.f32 %v1162, %v1296
    %v1329 = vmax.f32 %v1167, %v1297
    %v1330 = vmax.f32 %v1172, %v1298
    %v1331 = vmax.f32 %v1177, %v1299
    %v1332 = vmax.f32 %v1182, %v1300
    %v1333 = vmax.f32 %v1187, %v1301
    %v1334 = vmax.f32 %v1192, %v1302
    %v1335 = vmax.f32 %v1197, %v1303
    %v1336 = vmax.f32 %v1202, %v1304
    %v1337 = vmax.f32 %v1207, %v1305
    %v1338 = vmax.f32 %v1212, %v1306
    %v1339 = vmax.f32 %v1217, %v1307
    %v1340 = vmax.f32 %v1222, %v1308
    %v1341 = vmax.f32 %v1227, %v1309
    %v1342 = vmax.f32 %v1232, %v1310
    %v1343 = vmax.f32 %v1237, %v1311
    %v1344 = vmax.f32 %v1242, %v1312
    %v1345 = vmax.f32 %v1247, %v1313
    %v1346 = vmax.f32 %v1252, %v1314
    %v1347 = vmax.f32 %v1257, %v1315
    %v1348 = vmax.f32 %v1262, %v1316
    %v1349 = vmax.f32 %v1267, %v1317
    %v1350 = vmax.f32 %v1272, %v1318
    %v1351 = vmax.f32 %v1277, %v1319
    %v1352 = vmax.f32 %v1282, %v1320
    %v1353 = vmax.f32 %v1287, %v1321
    %v1354 = vld [vmem:[%s6] sm:$0xff]
    %v1355 = vld [vmem:[%s6 + $0x8] sm:$0xff]
    %v1356 = vld [vmem:[%s6 + $0x10] sm:$0xff]
    %v1357 = vld [vmem:[%s6 + $0x18] sm:$0xff]
    %v1358 = vld [vmem:[%s6 + $0x20] sm:$0xff]
    %v1359 = vld [vmem:[%s6 + $0x28] sm:$0xff]
    %v1360 = vld [vmem:[%s6 + $0x30] sm:$0xff]
    %v1361 = vld [vmem:[%s6 + $0x38] sm:$0xff]
    %v1362 = vld [vmem:[%s6 + $0x40] sm:$0xff]
    %v1363 = vld [vmem:[%s6 + $0x48] sm:$0xff]
    %v1364 = vld [vmem:[%s6 + $0x50] sm:$0xff]
    %v1365 = vld [vmem:[%s6 + $0x58] sm:$0xff]
    %v1366 = vld [vmem:[%s6 + $0x60] sm:$0xff]
    %v1367 = vld [vmem:[%s6 + $0x68] sm:$0xff]
    %v1368 = vld [vmem:[%s6 + $0x70] sm:$0xff]
    %v1369 = vld [vmem:[%s6 + $0x78] sm:$0xff]
    %v1370 = vld [vmem:[%s6 + $0x80] sm:$0xff]
    %v1371 = vld [vmem:[%s6 + $0x88] sm:$0xff]
    %v1372 = vld [vmem:[%s6 + $0x90] sm:$0xff]
    %v1373 = vld [vmem:[%s6 + $0x98] sm:$0xff]
    %v1374 = vld [vmem:[%s6 + $0xa0] sm:$0xff]
    %v1375 = vld [vmem:[%s6 + $0xa8] sm:$0xff]
    %v1376 = vld [vmem:[%s6 + $0xb0] sm:$0xff]
    %v1377 = vld [vmem:[%s6 + $0xb8] sm:$0xff]
    %v1378 = vld [vmem:[%s6 + $0xc0] sm:$0xff]
    %v1379 = vld [vmem:[%s6 + $0xc8] sm:$0xff]
    %v1380 = vld [vmem:[%s6 + $0xd0] sm:$0xff]
    %v1381 = vld [vmem:[%s6 + $0xd8] sm:$0xff]
    %v1382 = vld [vmem:[%s6 + $0xe0] sm:$0xff]
    %v1383 = vld [vmem:[%s6 + $0xe8] sm:$0xff]
    %v1384 = vld [vmem:[%s6 + $0xf0] sm:$0xff]
    %v1385 = vld [vmem:[%s6 + $0xf8] sm:$0xff]
    %1387 = vset.pattern.permute.xlu0 0
    %1388 = vperm.xlu0 %1387, %v1354
    %v1389 = vpop.permute.xlu0 %1388
    %1392 = vset.pattern.permute.xlu0 0
    %1393 = vperm.xlu0 %1392, %v1355
    %v1394 = vpop.permute.xlu0 %1393
    %1397 = vset.pattern.permute.xlu0 0
    %1398 = vperm.xlu0 %1397, %v1356
    %v1399 = vpop.permute.xlu0 %1398
    %1402 = vset.pattern.permute.xlu0 0
    %1403 = vperm.xlu0 %1402, %v1357
    %v1404 = vpop.permute.xlu0 %1403
    %1407 = vset.pattern.permute.xlu0 0
    %1408 = vperm.xlu0 %1407, %v1358
    %v1409 = vpop.permute.xlu0 %1408
    %1412 = vset.pattern.permute.xlu0 0
    %1413 = vperm.xlu0 %1412, %v1359
    %v1414 = vpop.permute.xlu0 %1413
    %1417 = vset.pattern.permute.xlu0 0
    %1418 = vperm.xlu0 %1417, %v1360
    %v1419 = vpop.permute.xlu0 %1418
    %1422 = vset.pattern.permute.xlu0 0
    %1423 = vperm.xlu0 %1422, %v1361
    %v1424 = vpop.permute.xlu0 %1423
    %1427 = vset.pattern.permute.xlu0 0
    %1428 = vperm.xlu0 %1427, %v1362
    %v1429 = vpop.permute.xlu0 %1428
    %1432 = vset.pattern.permute.xlu0 0
    %1433 = vperm.xlu0 %1432, %v1363
    %v1434 = vpop.permute.xlu0 %1433
    %1437 = vset.pattern.permute.xlu0 0
    %1438 = vperm.xlu0 %1437, %v1364
    %v1439 = vpop.permute.xlu0 %1438
    %1442 = vset.pattern.permute.xlu0 0
    %1443 = vperm.xlu0 %1442, %v1365
    %v1444 = vpop.permute.xlu0 %1443
    %1447 = vset.pattern.permute.xlu0 0
    %1448 = vperm.xlu0 %1447, %v1366
    %v1449 = vpop.permute.xlu0 %1448
    %1452 = vset.pattern.permute.xlu0 0
    %1453 = vperm.xlu0 %1452, %v1367
    %v1454 = vpop.permute.xlu0 %1453
    %1457 = vset.pattern.permute.xlu0 0
    %1458 = vperm.xlu0 %1457, %v1368
    %v1459 = vpop.permute.xlu0 %1458
    %1462 = vset.pattern.permute.xlu0 0
    %1463 = vperm.xlu0 %1462, %v1369
    %v1464 = vpop.permute.xlu0 %1463
    %1467 = vset.pattern.permute.xlu0 0
    %1468 = vperm.xlu0 %1467, %v1370
    %v1469 = vpop.permute.xlu0 %1468
    %1472 = vset.pattern.permute.xlu0 0
    %1473 = vperm.xlu0 %1472, %v1371
    %v1474 = vpop.permute.xlu0 %1473
    %1477 = vset.pattern.permute.xlu0 0
    %1478 = vperm.xlu0 %1477, %v1372
    %v1479 = vpop.permute.xlu0 %1478
    %1482 = vset.pattern.permute.xlu0 0
    %1483 = vperm.xlu0 %1482, %v1373
    %v1484 = vpop.permute.xlu0 %1483
    %1487 = vset.pattern.permute.xlu0 0
    %1488 = vperm.xlu0 %1487, %v1374
    %v1489 = vpop.permute.xlu0 %1488
    %1492 = vset.pattern.permute.xlu0 0
    %1493 = vperm.xlu0 %1492, %v1375
    %v1494 = vpop.permute.xlu0 %1493
    %1497 = vset.pattern.permute.xlu0 0
    %1498 = vperm.xlu0 %1497, %v1376
    %v1499 = vpop.permute.xlu0 %1498
    %1502 = vset.pattern.permute.xlu0 0
    %1503 = vperm.xlu0 %1502, %v1377
    %v1504 = vpop.permute.xlu0 %1503
    %1507 = vset.pattern.permute.xlu0 0
    %1508 = vperm.xlu0 %1507, %v1378
    %v1509 = vpop.permute.xlu0 %1508
    %1512 = vset.pattern.permute.xlu0 0
    %1513 = vperm.xlu0 %1512, %v1379
    %v1514 = vpop.permute.xlu0 %1513
    %1517 = vset.pattern.permute.xlu0 0
    %1518 = vperm.xlu0 %1517, %v1380
    %v1519 = vpop.permute.xlu0 %1518
    %1522 = vset.pattern.permute.xlu0 0
    %1523 = vperm.xlu0 %1522, %v1381
    %v1524 = vpop.permute.xlu0 %1523
    %1527 = vset.pattern.permute.xlu0 0
    %1528 = vperm.xlu0 %1527, %v1382
    %v1529 = vpop.permute.xlu0 %1528
    %1532 = vset.pattern.permute.xlu0 0
    %1533 = vperm.xlu0 %1532, %v1383
    %v1534 = vpop.permute.xlu0 %1533
    %1537 = vset.pattern.permute.xlu0 0
    %1538 = vperm.xlu0 %1537, %v1384
    %v1539 = vpop.permute.xlu0 %1538
    %1542 = vset.pattern.permute.xlu0 0
    %1543 = vperm.xlu0 %1542, %v1385
    %v1544 = vpop.permute.xlu0 %1543
    %v1546 = vmul.f32 %v1322, %v1389
    %v1547 = vmul.f32 %v1323, %v1394
    %v1548 = vmul.f32 %v1324, %v1399
    %v1549 = vmul.f32 %v1325, %v1404
    %v1550 = vmul.f32 %v1326, %v1409
    %v1551 = vmul.f32 %v1327, %v1414
    %v1552 = vmul.f32 %v1328, %v1419
    %v1553 = vmul.f32 %v1329, %v1424
    %v1554 = vmul.f32 %v1330, %v1429
    %v1555 = vmul.f32 %v1331, %v1434
    %v1556 = vmul.f32 %v1332, %v1439
    %v1557 = vmul.f32 %v1333, %v1444
    %v1558 = vmul.f32 %v1334, %v1449
    %v1559 = vmul.f32 %v1335, %v1454
    %v1560 = vmul.f32 %v1336, %v1459
    %v1561 = vmul.f32 %v1337, %v1464
    %v1562 = vmul.f32 %v1338, %v1469
    %v1563 = vmul.f32 %v1339, %v1474
    %v1564 = vmul.f32 %v1340, %v1479
    %v1565 = vmul.f32 %v1341, %v1484
    %v1566 = vmul.f32 %v1342, %v1489
    %v1567 = vmul.f32 %v1343, %v1494
    %v1568 = vmul.f32 %v1344, %v1499
    %v1569 = vmul.f32 %v1345, %v1504
    %v1570 = vmul.f32 %v1346, %v1509
    %v1571 = vmul.f32 %v1347, %v1514
    %v1572 = vmul.f32 %v1348, %v1519
    %v1573 = vmul.f32 %v1349, %v1524
    %v1574 = vmul.f32 %v1350, %v1529
    %v1575 = vmul.f32 %v1351, %v1534
    %v1576 = vmul.f32 %v1352, %v1539
    %v1577 = vmul.f32 %v1353, %v1544
    %vm1578 = vcmask 64512
    %v1579 = vsel %vm1578, %v1546, 0.0
    %v1580 = vsel %vm1578, %v1547, 0.0
    %v1581 = vadd.f32 %v1579, %v1580
    %v1582 = vsel %vm1578, %v1548, 0.0
    %v1583 = vadd.f32 %v1581, %v1582
    %v1584 = vsel %vm1578, %v1549, 0.0
    %v1585 = vadd.f32 %v1583, %v1584
    %v1586 = vsel %vm1578, %v1550, 0.0
    %v1587 = vadd.f32 %v1585, %v1586
    %v1588 = vsel %vm1578, %v1551, 0.0
    %v1589 = vadd.f32 %v1587, %v1588
    %v1590 = vsel %vm1578, %v1552, 0.0
    %v1591 = vadd.f32 %v1589, %v1590
    %v1592 = vsel %vm1578, %v1553, 0.0
    %v1593 = vadd.f32 %v1591, %v1592
    %v1594 = vsel %vm1578, %v1554, 0.0
    %v1595 = vadd.f32 %v1593, %v1594
    %v1596 = vsel %vm1578, %v1555, 0.0
    %v1597 = vadd.f32 %v1595, %v1596
    %v1598 = vsel %vm1578, %v1556, 0.0
    %v1599 = vadd.f32 %v1597, %v1598
    %v1600 = vsel %vm1578, %v1557, 0.0
    %v1601 = vadd.f32 %v1599, %v1600
    %v1602 = vsel %vm1578, %v1558, 0.0
    %v1603 = vadd.f32 %v1601, %v1602
    %v1604 = vsel %vm1578, %v1559, 0.0
    %v1605 = vadd.f32 %v1603, %v1604
    %v1606 = vsel %vm1578, %v1560, 0.0
    %v1607 = vadd.f32 %v1605, %v1606
    %v1608 = vsel %vm1578, %v1561, 0.0
    %v1609 = vadd.f32 %v1607, %v1608
    %v1610 = vsel %vm1578, %v1562, 0.0
    %v1611 = vadd.f32 %v1609, %v1610
    %v1612 = vsel %vm1578, %v1563, 0.0
    %v1613 = vadd.f32 %v1611, %v1612
    %v1614 = vsel %vm1578, %v1564, 0.0
    %v1615 = vadd.f32 %v1613, %v1614
    %v1616 = vsel %vm1578, %v1565, 0.0
    %v1617 = vadd.f32 %v1615, %v1616
    %v1618 = vsel %vm1578, %v1566, 0.0
    %v1619 = vadd.f32 %v1617, %v1618
    %v1620 = vsel %vm1578, %v1567, 0.0
    %v1621 = vadd.f32 %v1619, %v1620
    %v1622 = vsel %vm1578, %v1568, 0.0
    %v1623 = vadd.f32 %v1621, %v1622
    %v1624 = vsel %vm1578, %v1569, 0.0
    %v1625 = vadd.f32 %v1623, %v1624
    %v1626 = vsel %vm1578, %v1570, 0.0
    %v1627 = vadd.f32 %v1625, %v1626
    %v1628 = vsel %vm1578, %v1571, 0.0
    %v1629 = vadd.f32 %v1627, %v1628
    %v1630 = vsel %vm1578, %v1572, 0.0
    %v1631 = vadd.f32 %v1629, %v1630
    %v1632 = vsel %vm1578, %v1573, 0.0
    %v1633 = vadd.f32 %v1631, %v1632
    %v1634 = vsel %vm1578, %v1574, 0.0
    %v1635 = vadd.f32 %v1633, %v1634
    %v1636 = vsel %vm1578, %v1575, 0.0
    %v1637 = vadd.f32 %v1635, %v1636
    %v1638 = vsel %vm1578, %v1576, 0.0
    %v1639 = vadd.f32 %v1637, %v1638
    %v1640 = vsel %vm1578, %v1577, 0.0
    %v1641 = vadd.f32 %v1639, %v1640
    %v1642 = vrot.slane %v1641, 4
    %v1643 = vadd.f32 %v1641, %v1642
    %v1644 = vrot.slane %v1643, 2
    %v1645 = vadd.f32 %v1643, %v1644
    %v1646 = vrot.slane %v1645, 1
    %v1647 = vadd.f32 %v1645, %v1646
    %s1648 = sld [smem:[#allocation2]]
    %v1649 = vstv %s1648
    %v1650 = vadd.f32 %v1647, %v1649
    %vm1651 = vcmask 57344
    %1652 = vst.msk [vmem:[#allocation3] sm:$0x1] %vm1651, %v1650
    // Predicated region
    $region34: #{tpu_custom_call.1} parent=1 // pred_check
      _
    $region35: #{tpu_custom_call.1} parent=1 // pred_check_branch
      %1654 = sbr.rel (0) target = $region37
    $region36: #{tpu_custom_call.1} parent=1 // pred_region
      %s1656 = ssub.s32 16, 16
      %1657 = vsyncadd [#allocation4], %s1656
      %s1659 = sshll.u32 [#allocation3], 4
      %s1660 = int_to_ptr.vmem [resolvable:$true] %s1659
      %1662 = dma.vmem_to_hbm [thread:$0]  %s1660, 16, %s8, [#allocation4]
    $region37: #{tpu_custom_call.1} parent=1 // pred_fallthru
      _
    // Predicated region
    $region38: #{tpu_custom_call.1} parent=1 // pred_check
      _
    $region39: #{tpu_custom_call.1} parent=1 // pred_check_branch
      %1664 = sbr.rel (0) target = $region41
    $region40: #{tpu_custom_call.1} parent=1 // pred_region
      %1665 = dma.done [#allocation4], 16
    $region41: #{tpu_custom_call.1} parent=1 // pred_fallthru
      _
    %1666 = vsyncpa [#allocation4], 1

</llo_original>
